<compile_context>
chip_gen: v7x
topology: tpu7x:2x2x1
jax: 0.10.0
libtpu: 0.0.40
codegen_flags: <defaults>
</compile_context>

<pallas_src>
import functools

import jax
import jax.numpy as jnp
from jax import lax
from jax.experimental import pallas as pl
from jax.experimental.pallas import tpu as pltpu


def _round_up(x, m):
    return ((x + m - 1) // m) * m


def _pick_th(h_p, th):
    """Largest multiple of 128 that is <= th and divides h_p (>=128 always works)."""
    th = max(128, (int(th) // 128) * 128)
    th = min(th, h_p)
    while h_p % th != 0:
        th -= 128
    return th


# --------------------------------------------------------------------------
# Path 1: weights resident in VMEM, 1-D grid over M, in-kernel H reduction.
# --------------------------------------------------------------------------
def _ffn_resident_kernel(x_ref, w1t_ref, b1_ref, w2t_ref, b2_ref, o_ref, *, th, n_h):
    x = x_ref[...].astype(w1t_ref.dtype)          # f32 -> bf16 cast on the VPU

    def h_chunk(start):
        w1c = w1t_ref[:, pl.ds(start, th)]                        # (D_p, TH) bf16
        b1c = b1_ref[:, pl.ds(start, th)]                         # (1, TH)  f32
        h = jnp.dot(x, w1c, preferred_element_type=jnp.float32)   # MXU, f32 acc
        h = jnp.maximum(h + b1c, 0.0)                             # bias + ReLU (f32, VPU)
        # Dropout == identity in eval mode.
        return jnp.dot(h.astype(w2t_ref.dtype),
                       w2t_ref[pl.ds(start, th), :],
                       preferred_element_type=jnp.float32)        # (TM, D_p) f32

    if n_h == 1:
        acc = h_chunk(0)
    else:
        def body(h, acc):
            return acc + h_chunk(pl.multiple_of(h * th, 128))
        acc = lax.fori_loop(
            0, n_h, body,
            jnp.zeros((x_ref.shape[0], o_ref.shape[1]), jnp.float32),
            unroll=(n_h <= 8))

    o_ref[...] = (acc + b2_ref[...]).astype(o_ref.dtype)


# --------------------------------------------------------------------------
# Path 2 (fallback): stream weight chunks along an "arbitrary" H grid axis.
# --------------------------------------------------------------------------
def _ffn_streamed_kernel(x_ref, w1t_ref, b1_ref, w2t_ref, b2_ref, o_ref, acc_ref):
    h_idx = pl.program_id(1)

    @pl.when(h_idx == 0)
    def _():
        acc_ref[...] = jnp.zeros_like(acc_ref)

    x = x_ref[...].astype(w1t_ref.dtype)
    h = jnp.dot(x, w1t_ref[...], preferred_element_type=jnp.float32)
    h = jnp.maximum(h + b1_ref[...], 0.0)
    acc_ref[...] += jnp.dot(h.astype(w2t_ref.dtype), w2t_ref[...],
                            preferred_element_type=jnp.float32)

    @pl.when(h_idx == pl.num_programs(1) - 1)
    def _():
        o_ref[...] = (acc_ref[...] + b2_ref[...]).astype(o_ref.dtype)


def prepare_ffn_params(w1, b1, w2, b2, compute_dtype=jnp.bfloat16):
    """One-time parameter prep (PyTorch nn.Linear layout in, kernel layout out).

    w1: (hidden, d_model), b1: (hidden,), w2: (d_model, hidden), b2: (d_model,)
    Returns (w1t, b1_2d, w2t, b2_2d): weights transposed, padded to 128-multiples
    and cast to bf16; biases padded and kept f32.
    """
    H, D = w1.shape
    D_p = _round_up(D, 128)
    H_p = _round_up(H, 128)

    w1_p = jnp.pad(w1, ((0, H_p - H), (0, D_p - D)))
    w2_p = jnp.pad(w2, ((0, D_p - D), (0, H_p - H)))
    w1t = w1_p.T.astype(compute_dtype)            # (D_p, H_p)
    w2t = w2_p.T.astype(compute_dtype)            # (H_p, D_p)
    b1_2d = jnp.pad(b1, (0, H_p - H)).reshape(1, H_p).astype(jnp.float32)
    b2_2d = jnp.pad(b2, (0, D_p - D)).reshape(1, D_p).astype(jnp.float32)
    return w1t, b1_2d, w2t, b2_2d


def positionwise_feed_forward(x, params, *, tm=1024, th=512, out_dtype=None):
    """x: (..., d_model); params from prepare_ffn_params."""
    w1t, b1_2d, w2t, b2_2d = params
    D_p, H_p = w1t.shape
    orig_shape = x.shape
    D = orig_shape[-1]
    M = int(x.size // D)
    out_dtype = out_dtype if out_dtype is not None else x.dtype
    x_bytes = jnp.dtype(x.dtype).itemsize
    out_bytes = jnp.dtype(out_dtype).itemsize

    # Token tile: multiple of 8 (f32 sublane), capped at M; ragged last block is
    # handled by Pallas (no explicit M padding, no output slice over M).
    TM = min(_round_up(int(tm), 8), _round_up(M, 8))
    n_m = pl.cdiv(M, TM)

    x2d = x.reshape(M, D)
    if D_p != D:
        x2d = jnp.pad(x2d, ((0, 0), (0, D_p - D)))   # lane padding only when needed

    # Generation-aware VMEM capacity (128 MiB v5e/v6e, 64 MiB per core on v7x).
    try:
        vmem_cap = int(pltpu.get_tpu_info().vmem_capacity_bytes)
    except Exception:
        vmem_cap = 64 << 20   # conservative fallback (v7x)

    weight_bytes = ((w1t.size + w2t.size) * jnp.dtype(w1t.dtype).itemsize
                    + (b1_2d.size + b2_2d.size) * 4)
    flops = 4 * M * D_p * H_p   # two matmuls, 2*M*K*N each

    TH = _pick_th(H_p, th)      # multiple of 128 dividing H_p (fixes old TH guard)
    n_h = H_p // TH

    resident_bytes = (weight_bytes
                      + 2 * TM * D_p * x_bytes      # double-buffered x tiles (f32)
                      + 2 * TM * D_p * out_bytes    # double-buffered out tiles
                      + TM * D_p * 4                # f32 accumulator
                      + TM * TH * 4                 # f32 hidden chunk
                      + TM * TH * 2)                # bf16 hidden chunk (2nd dot operand)
    use_resident = resident_bytes <= int(0.6 * vmem_cap)

    if use_resident:
        vmem_limit = min(max(int(1.3 * resident_bytes) + (8 << 20), 32 << 20),
                         int(0.9 * vmem_cap))
        cost = pl.CostEstimate(
            flops=flops, transcendentals=0,
            bytes_accessed=(x2d.size * x_bytes + weight_bytes + M * D_p * out_bytes))
        kernel = functools.partial(_ffn_resident_kernel, th=TH, n_h=n_h)
        out2d = pl.pallas_call(
            kernel,
            out_shape=jax.ShapeDtypeStruct((M, D_p), out_dtype),
            grid_spec=pltpu.PrefetchScalarGridSpec(
                num_scalar_prefetch=0,
                grid=(n_m,),
                in_specs=[
                    pl.BlockSpec((TM, D_p), lambda i: (i, 0)),    # x tile (f32, streamed)
                    pl.BlockSpec((D_p, H_p), lambda i: (0, 0)),   # W1^T (resident)
                    pl.BlockSpec((1, H_p), lambda i: (0, 0)),     # b1   (resident)
                    pl.BlockSpec((H_p, D_p), lambda i: (0, 0)),   # W2^T (resident)
                    pl.BlockSpec((1, D_p), lambda i: (0, 0)),     # b2   (resident)
                ],
                out_specs=pl.BlockSpec((TM, D_p), lambda i: (i, 0)),
            ),
            compiler_params=pltpu.CompilerParams(
                dimension_semantics=("parallel",),
                vmem_limit_bytes=vmem_limit,
            ),
            cost_estimate=cost,
        )(x2d, w1t, b1_2d, w2t, b2_2d)
    else:
        streamed_bytes = (2 * TM * D_p * x_bytes
                          + 3 * D_p * TH * 2 + 3 * TH * D_p * 2   # buffered weight chunks
                          + 2 * TH * 4 + D_p * 4
                          + 2 * TM * D_p * out_bytes
                          + TM * D_p * 4
                          + TM * TH * 4 + TM * TH * 2)
        vmem_limit = min(max(int(1.3 * streamed_bytes) + (8 << 20), 32 << 20),
                         int(0.9 * vmem_cap))
        cost = pl.CostEstimate(
            flops=flops, transcendentals=0,
            bytes_accessed=(x2d.size * x_bytes + n_m * weight_bytes
                            + M * D_p * out_bytes))
        # Extra weight buffer hides the DMA bubble at each M-tile boundary.
        w_pipe = {"pipeline_mode": pl.Buffered(3)} if n_h >= 3 else {}
        out2d = pl.pallas_call(
            _ffn_streamed_kernel,
            out_shape=jax.ShapeDtypeStruct((M, D_p), out_dtype),
            grid_spec=pltpu.PrefetchScalarGridSpec(
                num_scalar_prefetch=0,
                grid=(n_m, n_h),
                in_specs=[
                    pl.BlockSpec((TM, D_p), lambda i, h: (i, 0)),            # x tile
                    pl.BlockSpec((D_p, TH), lambda i, h: (0, h), **w_pipe),  # W1^T chunk
                    pl.BlockSpec((1, TH), lambda i, h: (0, h)),              # b1 chunk
                    pl.BlockSpec((TH, D_p), lambda i, h: (h, 0), **w_pipe),  # W2^T chunk
                    pl.BlockSpec((1, D_p), lambda i, h: (0, 0)),             # b2
                ],
                out_specs=pl.BlockSpec((TM, D_p), lambda i, h: (i, 0)),
                scratch_shapes=[pltpu.VMEM((TM, D_p), jnp.float32)],
            ),
            compiler_params=pltpu.CompilerParams(
                dimension_semantics=("parallel", "arbitrary"),
                vmem_limit_bytes=vmem_limit,
            ),
            cost_estimate=cost,
        )(x2d, w1t, b1_2d, w2t, b2_2d)

    if D_p != D:
        out2d = out2d[:, :D]
    return out2d.reshape(orig_shape)


if __name__ == "__main__":
    # Small lane-dense shapes consistent with the module (d_model tokens, 4x hidden).
    batch, seq, d_model, hidden = 4, 64, 128, 512

    key = jax.random.PRNGKey(0)
    kx, kw1, kb1, kw2, kb2 = jax.random.split(key, 5)

    x = jax.random.normal(kx, (batch, seq, d_model), dtype=jnp.float32)

    # Deterministic init mirroring nn.Linear: U(-1/sqrt(fan_in), 1/sqrt(fan_in))
    bound1 = 1.0 / (d_model ** 0.5)
    w1 = jax.random.uniform(kw1, (hidden, d_model), jnp.float32, -bound1, bound1)
    b1 = jax.random.uniform(kb1, (hidden,), jnp.float32, -bound1, bound1)
    bound2 = 1.0 / (hidden ** 0.5)
    w2 = jax.random.uniform(kw2, (d_model, hidden), jnp.float32, -bound2, bound2)
    b2 = jax.random.uniform(kb2, (d_model,), jnp.float32, -bound2, bound2)

    params = prepare_ffn_params(w1, b1, w2, b2)   # one-time transpose/pad/cast
    out = positionwise_feed_forward(x, params)
    jax.block_until_ready(out)

    # Reference in plain JAX (same math as the PyTorch module in eval mode).
    ref = jnp.maximum(x @ w1.T + b1, 0.0) @ w2.T + b2
    assert out.shape == ref.shape
    # bf16 MXU operands (x, W1, hidden, W2) with f32 accumulation -> loosened tol.
    assert jnp.allclose(out, ref, atol=5e-2, rtol=5e-2), "mismatch vs reference"

    print("KERNEL_OK")
</pallas_src>

<mosaic_0001>
module attributes {stable_mosaic.version = 11 : i64} {
  func.func @_ffn_resident_kernel(%arg0: i32, %arg1: memref<256x128xf32, #tpu.memory_space<vmem>>, %arg2: memref<128x512xbf16, #tpu.memory_space<vmem>>, %arg3: memref<1x512xf32, #tpu.memory_space<vmem>>, %arg4: memref<512x128xbf16, #tpu.memory_space<vmem>>, %arg5: memref<1x128xf32, #tpu.memory_space<vmem>>, %arg6: memref<256x128xf32, #tpu.memory_space<vmem>>) attributes {dimension_semantics = [#tpu.dimension_semantics<parallel>], iteration_bounds = array<i64: 1>, scalar_prefetch = 0 : i64, scratch_operands = 0 : i64, tpu.core_type = #tpu.core_type<tc>, window_params = [{transform_indices = @transform_0, window_bounds = array<i64: 256, 128>}, {pipeline_mode = #tpu.pipeline_mode<synchronous>, transform_indices = @transform_1, window_bounds = array<i64: 128, 512>}, {pipeline_mode = #tpu.pipeline_mode<synchronous>, transform_indices = @transform_2, window_bounds = array<i64: 1, 512>}, {pipeline_mode = #tpu.pipeline_mode<synchronous>, transform_indices = @transform_3, window_bounds = array<i64: 512, 128>}, {pipeline_mode = #tpu.pipeline_mode<synchronous>, transform_indices = @transform_4, window_bounds = array<i64: 1, 128>}, {transform_indices = @transform_5, window_bounds = array<i64: 256, 128>}]} {
    %c0 = arith.constant 0 : index
    %c0_0 = arith.constant 0 : index
    %0 = vector.load %arg1[%c0, %c0_0] : memref<256x128xf32, #tpu.memory_space<vmem>>, vector<256x128xf32>
    %1 = arith.truncf %0 : vector<256x128xf32> to vector<256x128xbf16>
    %c0_1 = arith.constant 0 : index
    %c0_2 = arith.constant 0 : index
    %2 = vector.load %arg2[%c0_1, %c0_2] : memref<128x512xbf16, #tpu.memory_space<vmem>>, vector<128x512xbf16>
    %c0_3 = arith.constant 0 : index
    %c0_4 = arith.constant 0 : index
    %3 = vector.load %arg3[%c0_3, %c0_4] : memref<1x512xf32, #tpu.memory_space<vmem>>, vector<1x512xf32>
    %cst = arith.constant dense<0.000000e+00> : vector<256x512xf32>
    %4 = tpu.matmul %1, %2, %cst {dimension_numbers = #tpu.dot_dimension_numbers<[1], [0], [0], [1], [0, 0, 1, 1], [], []>} : vector<256x128xbf16>, vector<128x512xbf16>, vector<256x512xf32> -> vector<256x512xf32>
    %5 = vector.broadcast %3 : vector<1x512xf32> to vector<256x512xf32>
    %6 = arith.addf %4, %5 : vector<256x512xf32>
    %cst_5 = arith.constant 0.000000e+00 : f32
    %7 = vector.broadcast %cst_5 : f32 to vector<256x512xf32>
    %8 = arith.maximumf %6, %7 : vector<256x512xf32>
    %9 = arith.truncf %8 : vector<256x512xf32> to vector<256x512xbf16>
    %c0_6 = arith.constant 0 : index
    %c0_7 = arith.constant 0 : index
    %10 = vector.load %arg4[%c0_6, %c0_7] : memref<512x128xbf16, #tpu.memory_space<vmem>>, vector<512x128xbf16>
    %cst_8 = arith.constant dense<0.000000e+00> : vector<256x128xf32>
    %11 = tpu.matmul %9, %10, %cst_8 {dimension_numbers = #tpu.dot_dimension_numbers<[1], [0], [0], [1], [0, 0, 1, 1], [], []>} : vector<256x512xbf16>, vector<512x128xbf16>, vector<256x128xf32> -> vector<256x128xf32>
    %c0_9 = arith.constant 0 : index
    %c0_10 = arith.constant 0 : index
    %12 = vector.load %arg5[%c0_9, %c0_10] : memref<1x128xf32, #tpu.memory_space<vmem>>, vector<1x128xf32>
    %13 = vector.broadcast %12 : vector<1x128xf32> to vector<256x128xf32>
    %14 = arith.addf %11, %13 : vector<256x128xf32>
    %c0_11 = arith.constant 0 : index
    %c0_12 = arith.constant 0 : index
    %15 = vector.load %arg6[%c0_11, %c0_12] : memref<256x128xf32, #tpu.memory_space<vmem>>, vector<256x128xf32>
    tpu.vector_store %arg6[%c0_11, %c0_12], %14 {strides = array<i32>} : memref<256x128xf32, #tpu.memory_space<vmem>>, vector<256x128xf32>,
    return
  }
  func.func @transform_0(%arg0: i32) -> (i32, i32) {
    %c0_i32 = arith.constant 0 : i32
    %c0_i32_0 = arith.constant 0 : i32
    return %arg0, %c0_i32 : i32, i32
  }
  func.func @transform_1(%arg0: i32) -> (i32, i32) {
    %c0_i32 = arith.constant 0 : i32
    %c0_i32_0 = arith.constant 0 : i32
    %c0_i32_1 = arith.constant 0 : i32
    return %c0_i32, %c0_i32_0 : i32, i32
  }
  func.func @transform_2(%arg0: i32) -> (i32, i32) {
    %c0_i32 = arith.constant 0 : i32
    %c0_i32_0 = arith.constant 0 : i32
    %c0_i32_1 = arith.constant 0 : i32
    return %c0_i32, %c0_i32_0 : i32, i32
  }
  func.func @transform_3(%arg0: i32) -> (i32, i32) {
    %c0_i32 = arith.constant 0 : i32
    %c0_i32_0 = arith.constant 0 : i32
    %c0_i32_1 = arith.constant 0 : i32
    return %c0_i32, %c0_i32_0 : i32, i32
  }
  func.func @transform_4(%arg0: i32) -> (i32, i32) {
    %c0_i32 = arith.constant 0 : i32
    %c0_i32_0 = arith.constant 0 : i32
    %c0_i32_1 = arith.constant 0 : i32
    return %c0_i32, %c0_i32_0 : i32, i32
  }
  func.func @transform_5(%arg0: i32) -> (i32, i32) {
    %c0_i32 = arith.constant 0 : i32
    %c0_i32_0 = arith.constant 0 : i32
    return %arg0, %c0_i32 : i32, i32
  }
}

</mosaic_0001>

<llo_original>
// kernel: tpu_custom_call.1
$region0: #{tpu_custom_call.1}
  #allocation0 [shape = 'u32[]', space=smem, size = 0x4, offset = 0x4, fixed_abs, tag = 'smem constant byte address 0x4 - core index']
  #allocation1 [shape = 'u32[144,128]{1,0:T(1,128)}', space=vmem, size = 0x12000, scoped, tag = 'internal scratch']
  %s0 = inlined_call_operand.hbm [shape: f32[256,128], index: 0, kind: input, shape index: {}]
  %s1 = inlined_call_operand.hbm [shape: bf16[128,512], index: 1, kind: input, shape index: {}]
  %s2 = inlined_call_operand.vmem [shape: f32[1,512], index: 2, kind: input, shape index: {}]
  %s3 = inlined_call_operand.hbm [shape: bf16[512,128], index: 3, kind: input, shape index: {}]
  %s4 = inlined_call_operand.vmem [shape: f32[1,128], index: 4, kind: input, shape index: {}]
  %s5 = inlined_call_operand.hbm [shape: f32[256,128], index: 5, kind: output, shape index: {}]
  %s6 = sld [smem:[#allocation0]]
  $region42: #{tpu_custom_call.1} parent=0
    _
  %s8 = ssub.s32 1, %s6
  %s9 = scalar_select 0, %s8, %s6
  $region1: #{tpu_custom_call.1} parent=0
    #allocation2 [shape = 'u8[131072]{0}', space=vmem, size = 0x20000, scoped, tag = 'input window, operand 0, single buffered']
    #allocation3 [shape = 's32[1]{0}', space=sflag, size = 0x4, scoped, tag = 'scoped memory for tpu_custom_call.1']
    #allocation4 [shape = 's32[1]{0}', space=sflag, size = 0x4, scoped, tag = 'scoped memory for tpu_custom_call.1']
    #allocation5 [shape = 'u8[131072]{0}', space=vmem, size = 0x20000, scoped, tag = 'input window, operand 1, single buffered']
    #allocation6 [shape = 's32[1]{0}', space=sflag, size = 0x4, scoped, tag = 'scoped memory for tpu_custom_call.1']
    #allocation7 [shape = 'u8[131072]{0}', space=vmem, size = 0x20000, scoped, tag = 'input window, operand 3, single buffered']
    #allocation8 [shape = 'u8[131072]{0}', space=vmem, size = 0x20000, scoped, tag = 'output window, operand 0, single buffered']
    %10 = vsyncpa [#allocation3], 0
    %11 = vsyncpa [#allocation6], 0
    %12 = vsyncpa [#allocation4], 0
    // Predicated region
    $region2: #{tpu_custom_call.1} parent=1 // pred_check
      _
    $region3: #{tpu_custom_call.1} parent=1 // pred_check_branch
      %14 = sbr.rel (0) target = $region5
    $region4: #{tpu_custom_call.1} parent=1 // pred_region
      %s16 = ssub.s32 4096, 4096
      %17 = vsyncadd [#allocation3], %s16
      %s18 = sshll.u32 [#allocation2], 4
      %s19 = int_to_ptr.vmem [resolvable:$true] %s18
      %24 = dma.hbm_to_vmem [thread:$0]  %s0, 4096, %s19, [#allocation3], 128, 128, 8
    $region5: #{tpu_custom_call.1} parent=1 // pred_fallthru
      _
    // Predicated region
    $region6: #{tpu_custom_call.1} parent=1 // pred_check
      _
    $region7: #{tpu_custom_call.1} parent=1 // pred_check_branch
      %26 = sbr.rel (0) target = $region9
    $region8: #{tpu_custom_call.1} parent=1 // pred_region
      %s28 = ssub.s32 4096, 4096
      %29 = vsyncadd [#allocation6], %s28
      %s30 = sshll.u32 [#allocation5], 4
      %s31 = int_to_ptr.vmem [resolvable:$true] %s30
      %36 = dma.hbm_to_vmem [thread:$0]  %s1, 4096, %s31, [#allocation6], 256, 256, 16
    $region9: #{tpu_custom_call.1} parent=1 // pred_fallthru
      _
    // Predicated region
    $region10: #{tpu_custom_call.1} parent=1 // pred_check
      _
    $region11: #{tpu_custom_call.1} parent=1 // pred_check_branch
      %38 = sbr.rel (0) target = $region13
    $region12: #{tpu_custom_call.1} parent=1 // pred_region
      _
    $region13: #{tpu_custom_call.1} parent=1 // pred_fallthru
      _
    // Predicated region
    $region14: #{tpu_custom_call.1} parent=1 // pred_check
      _
    $region15: #{tpu_custom_call.1} parent=1 // pred_check_branch
      %40 = sbr.rel (0) target = $region17
    $region16: #{tpu_custom_call.1} parent=1 // pred_region
      %s42 = ssub.s32 4096, 4096
      %43 = vsyncadd [#allocation6], %s42
      %s44 = sshll.u32 [#allocation7], 4
      %s45 = int_to_ptr.vmem [resolvable:$true] %s44
      %50 = dma.hbm_to_vmem [thread:$0]  %s3, 4096, %s45, [#allocation6], 64, 64, 4
    $region17: #{tpu_custom_call.1} parent=1 // pred_fallthru
      _
    // Predicated region
    $region18: #{tpu_custom_call.1} parent=1 // pred_check
      _
    $region19: #{tpu_custom_call.1} parent=1 // pred_check_branch
      %52 = sbr.rel (0) target = $region21
    $region20: #{tpu_custom_call.1} parent=1 // pred_region
      _
    $region21: #{tpu_custom_call.1} parent=1 // pred_fallthru
      _
    // Predicated region
    $region22: #{tpu_custom_call.1} parent=1 // pred_check
      _
    $region23: #{tpu_custom_call.1} parent=1 // pred_check_branch
      %54 = sbr.rel (0) target = $region25
    $region24: #{tpu_custom_call.1} parent=1 // pred_region
      %55 = dma.done [#allocation3], 4096
    $region25: #{tpu_custom_call.1} parent=1 // pred_fallthru
      _
    // Predicated region
    $region26: #{tpu_custom_call.1} parent=1 // pred_check
      _
    $region27: #{tpu_custom_call.1} parent=1 // pred_check_branch
      %57 = sbr.rel (0) target = $region29
    $region28: #{tpu_custom_call.1} parent=1 // pred_region
      %58 = dma.done [#allocation6], 4096
    $region29: #{tpu_custom_call.1} parent=1 // pred_fallthru
      _
    // Predicated region
    $region30: #{tpu_custom_call.1} parent=1 // pred_check
      _
    $region31: #{tpu_custom_call.1} parent=1 // pred_check_branch
      %60 = sbr.rel (0) target = $region33
    $region32: #{tpu_custom_call.1} parent=1 // pred_region
      %61 = dma.done [#allocation6], 4096
    $region33: #{tpu_custom_call.1} parent=1 // pred_fallthru
      _
    %v63 = vld [vmem:[#allocation2] sm:$0xff]
    %v64 = vld [vmem:[#allocation2 + $0x8] sm:$0xff]
    %v65 = vld [vmem:[#allocation2 + $0x10] sm:$0xff]
    %v66 = vld [vmem:[#allocation2 + $0x18] sm:$0xff]
    %v67 = vld [vmem:[#allocation2 + $0x20] sm:$0xff]
    %v68 = vld [vmem:[#allocation2 + $0x28] sm:$0xff]
    %v69 = vld [vmem:[#allocation2 + $0x30] sm:$0xff]
    %v70 = vld [vmem:[#allocation2 + $0x38] sm:$0xff]
    %v71 = vld [vmem:[#allocation2 + $0x40] sm:$0xff]
    %v72 = vld [vmem:[#allocation2 + $0x48] sm:$0xff]
    %v73 = vld [vmem:[#allocation2 + $0x50] sm:$0xff]
    %v74 = vld [vmem:[#allocation2 + $0x58] sm:$0xff]
    %v75 = vld [vmem:[#allocation2 + $0x60] sm:$0xff]
    %v76 = vld [vmem:[#allocation2 + $0x68] sm:$0xff]
    %v77 = vld [vmem:[#allocation2 + $0x70] sm:$0xff]
    %v78 = vld [vmem:[#allocation2 + $0x78] sm:$0xff]
    %v79 = vld [vmem:[#allocation2 + $0x80] sm:$0xff]
    %v80 = vld [vmem:[#allocation2 + $0x88] sm:$0xff]
    %v81 = vld [vmem:[#allocation2 + $0x90] sm:$0xff]
    %v82 = vld [vmem:[#allocation2 + $0x98] sm:$0xff]
    %v83 = vld [vmem:[#allocation2 + $0xa0] sm:$0xff]
    %v84 = vld [vmem:[#allocation2 + $0xa8] sm:$0xff]
    %v85 = vld [vmem:[#allocation2 + $0xb0] sm:$0xff]
    %v86 = vld [vmem:[#allocation2 + $0xb8] sm:$0xff]
    %v87 = vld [vmem:[#allocation2 + $0xc0] sm:$0xff]
    %v88 = vld [vmem:[#allocation2 + $0xc8] sm:$0xff]
    %v89 = vld [vmem:[#allocation2 + $0xd0] sm:$0xff]
    %v90 = vld [vmem:[#allocation2 + $0xd8] sm:$0xff]
    %v91 = vld [vmem:[#allocation2 + $0xe0] sm:$0xff]
    %v92 = vld [vmem:[#allocation2 + $0xe8] sm:$0xff]
    %v93 = vld [vmem:[#allocation2 + $0xf0] sm:$0xff]
    %v94 = vld [vmem:[#allocation2 + $0xf8] sm:$0xff]
    %v95 = vpack.c.bf16 %v64, %v63
    %v96 = vpack.c.bf16 %v66, %v65
    %v97 = vpack.c.bf16 %v68, %v67
    %v98 = vpack.c.bf16 %v70, %v69
    %v99 = vpack.c.bf16 %v72, %v71
    %v100 = vpack.c.bf16 %v74, %v73
    %v101 = vpack.c.bf16 %v76, %v75
    %v102 = vpack.c.bf16 %v78, %v77
    %v103 = vpack.c.bf16 %v80, %v79
    %v104 = vpack.c.bf16 %v82, %v81
    %v105 = vpack.c.bf16 %v84, %v83
    %v106 = vpack.c.bf16 %v86, %v85
    %v107 = vpack.c.bf16 %v88, %v87
    %v108 = vpack.c.bf16 %v90, %v89
    %v109 = vpack.c.bf16 %v92, %v91
    %v110 = vpack.c.bf16 %v94, %v93
    %v111 = vld [vmem:[#allocation5] sm:$0xff]
    %v112 = vld [vmem:[#allocation5 + $0x8] sm:$0xff]
    %v113 = vld [vmem:[#allocation5 + $0x10] sm:$0xff]
    %v114 = vld [vmem:[#allocation5 + $0x18] sm:$0xff]
    %v115 = vld [vmem:[#allocation5 + $0x20] sm:$0xff]
    %v116 = vld [vmem:[#allocation5 + $0x28] sm:$0xff]
    %v117 = vld [vmem:[#allocation5 + $0x30] sm:$0xff]
    %v118 = vld [vmem:[#allocation5 + $0x38] sm:$0xff]
    %v119 = vld [vmem:[#allocation5 + $0x40] sm:$0xff]
    %v120 = vld [vmem:[#allocation5 + $0x48] sm:$0xff]
    %v121 = vld [vmem:[#allocation5 + $0x50] sm:$0xff]
    %v122 = vld [vmem:[#allocation5 + $0x58] sm:$0xff]
    %v123 = vld [vmem:[#allocation5 + $0x60] sm:$0xff]
    %v124 = vld [vmem:[#allocation5 + $0x68] sm:$0xff]
    %v125 = vld [vmem:[#allocation5 + $0x70] sm:$0xff]
    %v126 = vld [vmem:[#allocation5 + $0x78] sm:$0xff]
    %v127 = vld [vmem:[#allocation5 + $0x80] sm:$0xff]
    %v128 = vld [vmem:[#allocation5 + $0x88] sm:$0xff]
    %v129 = vld [vmem:[#allocation5 + $0x90] sm:$0xff]
    %v130 = vld [vmem:[#allocation5 + $0x98] sm:$0xff]
    %v131 = vld [vmem:[#allocation5 + $0xa0] sm:$0xff]
    %v132 = vld [vmem:[#allocation5 + $0xa8] sm:$0xff]
    %v133 = vld [vmem:[#allocation5 + $0xb0] sm:$0xff]
    %v134 = vld [vmem:[#allocation5 + $0xb8] sm:$0xff]
    %v135 = vld [vmem:[#allocation5 + $0xc0] sm:$0xff]
    %v136 = vld [vmem:[#allocation5 + $0xc8] sm:$0xff]
    %v137 = vld [vmem:[#allocation5 + $0xd0] sm:$0xff]
    %v138 = vld [vmem:[#allocation5 + $0xd8] sm:$0xff]
    %v139 = vld [vmem:[#allocation5 + $0xe0] sm:$0xff]
    %v140 = vld [vmem:[#allocation5 + $0xe8] sm:$0xff]
    %v141 = vld [vmem:[#allocation5 + $0xf0] sm:$0xff]
    %v142 = vld [vmem:[#allocation5 + $0xf8] sm:$0xff]
    %v143 = vld [vmem:[%s2] sm:$0xf]
    %v145 = vlaneseq
    %v146 = vshrl.u32 %v145, 7
    %v147 = vsub.s32 0, %v146
    %v148 = vrot.slane %v143, %v147
    %v149 = vlaneseq
    %v150 = vshrl.u32 %v149, 7
    %v151 = vsub.s32 1, %v150
    %v152 = vrot.slane %v143, %v151
    %v153 = vlaneseq
    %v154 = vshrl.u32 %v153, 7
    %v155 = vsub.s32 2, %v154
    %v156 = vrot.slane %v143, %v155
    %v157 = vlaneseq
    %v158 = vshrl.u32 %v157, 7
    %v159 = vsub.s32 3, %v158
    %v160 = vrot.slane %v143, %v159
    %v197 = vunpack.c.l.b16 %v111
    %v198 = vunpack.c.h.b16 %v111
    %v199 = vunpack.c.l.b16 %v112
    %v200 = vunpack.c.h.b16 %v112
    %v201 = vunpack.c.l.b16 %v113
    %v202 = vunpack.c.h.b16 %v113
    %v203 = vunpack.c.l.b16 %v114
    %v204 = vunpack.c.h.b16 %v114
    %v205 = vunpack.c.l.b16 %v115
    %v206 = vunpack.c.h.b16 %v115
    %v207 = vunpack.c.l.b16 %v116
    %v208 = vunpack.c.h.b16 %v116
    %v209 = vunpack.c.l.b16 %v117
    %v210 = vunpack.c.h.b16 %v117
    %v211 = vunpack.c.l.b16 %v118
    %v212 = vunpack.c.h.b16 %v118
    %v213 = vunpack.c.l.b16 %v119
    %v214 = vunpack.c.h.b16 %v119
    %v215 = vunpack.c.l.b16 %v120
    %v216 = vunpack.c.h.b16 %v120
    %v217 = vunpack.c.l.b16 %v121
    %v218 = vunpack.c.h.b16 %v121
    %v219 = vunpack.c.l.b16 %v122
    %v220 = vunpack.c.h.b16 %v122
    %v221 = vunpack.c.l.b16 %v123
    %v222 = vunpack.c.h.b16 %v123
    %v223 = vunpack.c.l.b16 %v124
    %v224 = vunpack.c.h.b16 %v124
    %v225 = vunpack.c.l.b16 %v125
    %v226 = vunpack.c.h.b16 %v125
    %v227 = vunpack.c.l.b16 %v126
    %v228 = vunpack.c.h.b16 %v126
    %v229 = vunpack.c.l.b16 %v127
    %v230 = vunpack.c.h.b16 %v127
    %v231 = vunpack.c.l.b16 %v128
    %v232 = vunpack.c.h.b16 %v128
    %v233 = vunpack.c.l.b16 %v129
    %v234 = vunpack.c.h.b16 %v129
    %v235 = vunpack.c.l.b16 %v130
    %v236 = vunpack.c.h.b16 %v130
    %v237 = vunpack.c.l.b16 %v131
    %v238 = vunpack.c.h.b16 %v131
    %v239 = vunpack.c.l.b16 %v132
    %v240 = vunpack.c.h.b16 %v132
    %v241 = vunpack.c.l.b16 %v133
    %v242 = vunpack.c.h.b16 %v133
    %v243 = vunpack.c.l.b16 %v134
    %v244 = vunpack.c.h.b16 %v134
    %v245 = vunpack.c.l.b16 %v135
    %v246 = vunpack.c.h.b16 %v135
    %v247 = vunpack.c.l.b16 %v136
    %v248 = vunpack.c.h.b16 %v136
    %v249 = vunpack.c.l.b16 %v137
    %v250 = vunpack.c.h.b16 %v137
    %v251 = vunpack.c.l.b16 %v138
    %v252 = vunpack.c.h.b16 %v138
    %v253 = vunpack.c.l.b16 %v139
    %v254 = vunpack.c.h.b16 %v139
    %v255 = vunpack.c.l.b16 %v140
    %v256 = vunpack.c.h.b16 %v140
    %v257 = vunpack.c.l.b16 %v141
    %v258 = vunpack.c.h.b16 %v141
    %v259 = vunpack.c.l.b16 %v142
    %v260 = vunpack.c.h.b16 %v142
    %v261 = vpack.c.b16 %v201, %v197
    %v262 = vpack.c.b16 %v202, %v198
    %v263 = vpack.c.b16 %v203, %v199
    %v264 = vpack.c.b16 %v204, %v200
    %v265 = vpack.c.b16 %v209, %v205
    %v266 = vpack.c.b16 %v210, %v206
    %v267 = vpack.c.b16 %v211, %v207
    %v268 = vpack.c.b16 %v212, %v208
    %v269 = vpack.c.b16 %v217, %v213
    %v270 = vpack.c.b16 %v218, %v214
    %v271 = vpack.c.b16 %v219, %v215
    %v272 = vpack.c.b16 %v220, %v216
    %v273 = vpack.c.b16 %v225, %v221
    %v274 = vpack.c.b16 %v226, %v222
    %v275 = vpack.c.b16 %v227, %v223
    %v276 = vpack.c.b16 %v228, %v224
    %v277 = vpack.c.b16 %v233, %v229
    %v278 = vpack.c.b16 %v234, %v230
    %v279 = vpack.c.b16 %v235, %v231
    %v280 = vpack.c.b16 %v236, %v232
    %v281 = vpack.c.b16 %v241, %v237
    %v282 = vpack.c.b16 %v242, %v238
    %v283 = vpack.c.b16 %v243, %v239
    %v284 = vpack.c.b16 %v244, %v240
    %v285 = vpack.c.b16 %v249, %v245
    %v286 = vpack.c.b16 %v250, %v246
    %v287 = vpack.c.b16 %v251, %v247
    %v288 = vpack.c.b16 %v252, %v248
    %v289 = vpack.c.b16 %v257, %v253
    %v290 = vpack.c.b16 %v258, %v254
    %v291 = vpack.c.b16 %v259, %v255
    %v292 = vpack.c.b16 %v260, %v256
    %325 = vmatprep.subr.bf16.mxu0 %v262
    %326 = vmatpush1.bf16.msra.mxu0 %v261
    %327 = vmatprep.subr.bf16.mxu0 %v266
    %328 = vmatpush1.bf16.msra.mxu0 %v265
    %329 = vmatprep.subr.bf16.mxu0 %v270
    %330 = vmatpush1.bf16.msra.mxu0 %v269
    %331 = vmatprep.subr.bf16.mxu0 %v274
    %332 = vmatpush1.bf16.msra.mxu0 %v273
    %333 = vmatprep.subr.bf16.mxu0 %v278
    %334 = vmatpush1.bf16.msra.mxu0 %v277
    %335 = vmatprep.subr.bf16.mxu0 %v282
    %336 = vmatpush1.bf16.msra.mxu0 %v281
    %337 = vmatprep.subr.bf16.mxu0 %v286
    %338 = vmatpush1.bf16.msra.mxu0 %v285
    %339 = vmatprep.subr.bf16.mxu0 %v290
    %340 = vmatpush1.bf16.msra.mxu0 %v289
    %341 = vmatprep.subr.bf16.mxu0 0
    %342 = vmatpush1.bf16.msra.mxu0 0
    %343 = vmatprep.subr.bf16.mxu0 0
    %344 = vmatpush1.bf16.msra.mxu0 0
    %345 = vmatprep.subr.bf16.mxu0 0
    %346 = vmatpush1.bf16.msra.mxu0 0
    %347 = vmatprep.subr.bf16.mxu0 0
    %348 = vmatpush1.bf16.msra.mxu0 0
    %349 = vmatprep.subr.bf16.mxu0 0
    %350 = vmatpush1.bf16.msra.mxu0 0
    %351 = vmatprep.subr.bf16.mxu0 0
    %352 = vmatpush1.bf16.msra.mxu0 0
    %353 = vmatprep.subr.bf16.mxu0 0
    %354 = vmatpush1.bf16.msra.mxu0 0
    %355 = vmatprep.subr.bf16.mxu0 0
    %356 = vmatpush1.bf16.msra.mxu0 0
    %357 = vmatprep.mubr.bf16.mxu0 0
    %358 = vmatmul.mubr.bf16.gmra.mrb[0].mxu0 %v95
    %v359 = vpop.f32.mrb[0].mxu0
    %v360 = vadd.f32 %v148, %v359
    %v361 = vpop.f32.mrb[0].mxu0
    %v362 = vadd.f32 %v152, %v361
    %v363 = vpop.f32.mrb[0].mxu0
    %v364 = vadd.f32 %v148, %v363
    %v365 = vpop.f32.mrb[0].mxu0
    %v366 = vadd.f32 %v152, %v365
    %367 = vmatprep.mubr.bf16.mxu0 0
    %368 = vmatmul.mubr.bf16.gmra.mrb[0].mxu0 %v96
    %v369 = vpop.f32.mrb[0].mxu0
    %v370 = vadd.f32 %v148, %v369
    %v371 = vpop.f32.mrb[0].mxu0
    %v372 = vadd.f32 %v152, %v371
    %v373 = vpop.f32.mrb[0].mxu0
    %v374 = vadd.f32 %v148, %v373
    %v375 = vpop.f32.mrb[0].mxu0
    %v376 = vadd.f32 %v152, %v375
    %377 = vmatprep.mubr.bf16.mxu0 0
    %378 = vmatmul.mubr.bf16.gmra.mrb[0].mxu0 %v97
    %v379 = vpop.f32.mrb[0].mxu0
    %v380 = vadd.f32 %v148, %v379
    %v381 = vpop.f32.mrb[0].mxu0
    %v382 = vadd.f32 %v152, %v381
    %v383 = vpop.f32.mrb[0].mxu0
    %v384 = vadd.f32 %v148, %v383
    %v385 = vpop.f32.mrb[0].mxu0
    %v386 = vadd.f32 %v152, %v385
    %387 = vmatprep.mubr.bf16.mxu0 0
    %388 = vmatmul.mubr.bf16.gmra.mrb[0].mxu0 %v98
    %v389 = vpop.f32.mrb[0].mxu0
    %v390 = vadd.f32 %v148, %v389
    %v391 = vpop.f32.mrb[0].mxu0
    %v392 = vadd.f32 %v152, %v391
    %v393 = vpop.f32.mrb[0].mxu0
    %v394 = vadd.f32 %v148, %v393
    %v395 = vpop.f32.mrb[0].mxu0
    %v396 = vadd.f32 %v152, %v395
    %397 = vmatprep.mubr.bf16.mxu0 0
    %398 = vmatmul.mubr.bf16.gmra.mrb[0].mxu0 %v99
    %v399 = vpop.f32.mrb[0].mxu0
    %v400 = vadd.f32 %v148, %v399
    %v401 = vpop.f32.mrb[0].mxu0
    %v402 = vadd.f32 %v152, %v401
    %v403 = vpop.f32.mrb[0].mxu0
    %v404 = vadd.f32 %v148, %v403
    %v405 = vpop.f32.mrb[0].mxu0
    %v406 = vadd.f32 %v152, %v405
    %407 = vmatprep.mubr.bf16.mxu0 0
    %408 = vmatmul.mubr.bf16.gmra.mrb[0].mxu0 %v100
    %v409 = vpop.f32.mrb[0].mxu0
    %v410 = vadd.f32 %v148, %v409
    %v411 = vpop.f32.mrb[0].mxu0
    %v412 = vadd.f32 %v152, %v411
    %v413 = vpop.f32.mrb[0].mxu0
    %v414 = vadd.f32 %v148, %v413
    %v415 = vpop.f32.mrb[0].mxu0
    %v416 = vadd.f32 %v152, %v415
    %417 = vmatprep.mubr.bf16.mxu0 0
    %418 = vmatmul.mubr.bf16.gmra.mrb[0].mxu0 %v101
    %v419 = vpop.f32.mrb[0].mxu0
    %v420 = vadd.f32 %v148, %v419
    %v421 = vpop.f32.mrb[0].mxu0
    %v422 = vadd.f32 %v152, %v421
    %v423 = vpop.f32.mrb[0].mxu0
    %v424 = vadd.f32 %v148, %v423
    %v425 = vpop.f32.mrb[0].mxu0
    %v426 = vadd.f32 %v152, %v425
    %427 = vmatprep.mubr.bf16.mxu0 0
    %428 = vmatmul.mubr.bf16.gmra.mrb[0].mxu0 %v102
    %v429 = vpop.f32.mrb[0].mxu0
    %v430 = vadd.f32 %v148, %v429
    %v431 = vpop.f32.mrb[0].mxu0
    %v432 = vadd.f32 %v152, %v431
    %v433 = vpop.f32.mrb[0].mxu0
    %v434 = vadd.f32 %v148, %v433
    %v435 = vpop.f32.mrb[0].mxu0
    %v436 = vadd.f32 %v152, %v435
    %437 = vmatprep.mubr.bf16.mxu0 0
    %438 = vmatmul.mubr.bf16.gmra.mrb[0].mxu0 %v103
    %v439 = vpop.f32.mrb[0].mxu0
    %v440 = vadd.f32 %v148, %v439
    %v441 = vpop.f32.mrb[0].mxu0
    %v442 = vadd.f32 %v152, %v441
    %v443 = vpop.f32.mrb[0].mxu0
    %v444 = vadd.f32 %v148, %v443
    %v445 = vpop.f32.mrb[0].mxu0
    %v446 = vadd.f32 %v152, %v445
    %447 = vmatprep.mubr.bf16.mxu0 0
    %448 = vmatmul.mubr.bf16.gmra.mrb[0].mxu0 %v104
    %v449 = vpop.f32.mrb[0].mxu0
    %v450 = vadd.f32 %v148, %v449
    %v451 = vpop.f32.mrb[0].mxu0
    %v452 = vadd.f32 %v152, %v451
    %v453 = vpop.f32.mrb[0].mxu0
    %v454 = vadd.f32 %v148, %v453
    %v455 = vpop.f32.mrb[0].mxu0
    %v456 = vadd.f32 %v152, %v455
    %457 = vmatprep.mubr.bf16.mxu0 0
    %458 = vmatmul.mubr.bf16.gmra.mrb[0].mxu0 %v105
    %v459 = vpop.f32.mrb[0].mxu0
    %v460 = vadd.f32 %v148, %v459
    %v461 = vpop.f32.mrb[0].mxu0
    %v462 = vadd.f32 %v152, %v461
    %v463 = vpop.f32.mrb[0].mxu0
    %v464 = vadd.f32 %v148, %v463
    %v465 = vpop.f32.mrb[0].mxu0
    %v466 = vadd.f32 %v152, %v465
    %467 = vmatprep.mubr.bf16.mxu0 0
    %468 = vmatmul.mubr.bf16.gmra.mrb[0].mxu0 %v106
    %v469 = vpop.f32.mrb[0].mxu0
    %v470 = vadd.f32 %v148, %v469
    %v471 = vpop.f32.mrb[0].mxu0
    %v472 = vadd.f32 %v152, %v471
    %v473 = vpop.f32.mrb[0].mxu0
    %v474 = vadd.f32 %v148, %v473
    %v475 = vpop.f32.mrb[0].mxu0
    %v476 = vadd.f32 %v152, %v475
    %477 = vmatprep.mubr.bf16.mxu0 0
    %478 = vmatmul.mubr.bf16.gmra.mrb[0].mxu0 %v107
    %v479 = vpop.f32.mrb[0].mxu0
    %v480 = vadd.f32 %v148, %v479
    %v481 = vpop.f32.mrb[0].mxu0
    %v482 = vadd.f32 %v152, %v481
    %v483 = vpop.f32.mrb[0].mxu0
    %v484 = vadd.f32 %v148, %v483
    %v485 = vpop.f32.mrb[0].mxu0
    %v486 = vadd.f32 %v152, %v485
    %487 = vmatprep.mubr.bf16.mxu0 0
    %488 = vmatmul.mubr.bf16.gmra.mrb[0].mxu0 %v108
    %v489 = vpop.f32.mrb[0].mxu0
    %v490 = vadd.f32 %v148, %v489
    %v491 = vpop.f32.mrb[0].mxu0
    %v492 = vadd.f32 %v152, %v491
    %v493 = vpop.f32.mrb[0].mxu0
    %v494 = vadd.f32 %v148, %v493
    %v495 = vpop.f32.mrb[0].mxu0
    %v496 = vadd.f32 %v152, %v495
    %497 = vmatprep.mubr.bf16.mxu0 0
    %498 = vmatmul.mubr.bf16.gmra.mrb[0].mxu0 %v109
    %v499 = vpop.f32.mrb[0].mxu0
    %v500 = vadd.f32 %v148, %v499
    %v501 = vpop.f32.mrb[0].mxu0
    %v502 = vadd.f32 %v152, %v501
    %v503 = vpop.f32.mrb[0].mxu0
    %v504 = vadd.f32 %v148, %v503
    %v505 = vpop.f32.mrb[0].mxu0
    %v506 = vadd.f32 %v152, %v505
    %507 = vmatprep.mubr.bf16.mxu0 0
    %508 = vmatmul.mubr.bf16.gmra.mrb[0].mxu0 %v110
    %v509 = vpop.f32.mrb[0].mxu0
    %v510 = vadd.f32 %v148, %v509
    %v511 = vpop.f32.mrb[0].mxu0
    %v512 = vadd.f32 %v152, %v511
    %v513 = vpop.f32.mrb[0].mxu0
    %v514 = vadd.f32 %v148, %v513
    %v515 = vpop.f32.mrb[0].mxu0
    %v516 = vadd.f32 %v152, %v515
    %517 = vdwg.mxu0
    %518 = vmatprep.subr.bf16.mxu0 %v264
    %519 = vmatpush1.bf16.msra.mxu0 %v263
    %520 = vmatprep.subr.bf16.mxu0 %v268
    %521 = vmatpush1.bf16.msra.mxu0 %v267
    %522 = vmatprep.subr.bf16.mxu0 %v272
    %523 = vmatpush1.bf16.msra.mxu0 %v271
    %524 = vmatprep.subr.bf16.mxu0 %v276
    %525 = vmatpush1.bf16.msra.mxu0 %v275
    %526 = vmatprep.subr.bf16.mxu0 %v280
    %527 = vmatpush1.bf16.msra.mxu0 %v279
    %528 = vmatprep.subr.bf16.mxu0 %v284
    %529 = vmatpush1.bf16.msra.mxu0 %v283
    %530 = vmatprep.subr.bf16.mxu0 %v288
    %531 = vmatpush1.bf16.msra.mxu0 %v287
    %532 = vmatprep.subr.bf16.mxu0 %v292
    %533 = vmatpush1.bf16.msra.mxu0 %v291
    %534 = vmatprep.subr.bf16.mxu0 0
    %535 = vmatpush1.bf16.msra.mxu0 0
    %536 = vmatprep.subr.bf16.mxu0 0
    %537 = vmatpush1.bf16.msra.mxu0 0
    %538 = vmatprep.subr.bf16.mxu0 0
    %539 = vmatpush1.bf16.msra.mxu0 0
    %540 = vmatprep.subr.bf16.mxu0 0
    %541 = vmatpush1.bf16.msra.mxu0 0
    %542 = vmatprep.subr.bf16.mxu0 0
    %543 = vmatpush1.bf16.msra.mxu0 0
    %544 = vmatprep.subr.bf16.mxu0 0
    %545 = vmatpush1.bf16.msra.mxu0 0
    %546 = vmatprep.subr.bf16.mxu0 0
    %547 = vmatpush1.bf16.msra.mxu0 0
    %548 = vmatprep.subr.bf16.mxu0 0
    %549 = vmatpush1.bf16.msra.mxu0 0
    %550 = vmatprep.mubr.bf16.mxu0 0
    %551 = vmatmul.mubr.bf16.gmra.mrb[0].mxu0 %v95
    %v552 = vpop.f32.mrb[0].mxu0
    %v553 = vadd.f32 %v156, %v552
    %v554 = vpop.f32.mrb[0].mxu0
    %v555 = vadd.f32 %v160, %v554
    %v556 = vpop.f32.mrb[0].mxu0
    %v557 = vadd.f32 %v156, %v556
    %v558 = vpop.f32.mrb[0].mxu0
    %v559 = vadd.f32 %v160, %v558
    %560 = vmatprep.mubr.bf16.mxu0 0
    %561 = vmatmul.mubr.bf16.gmra.mrb[0].mxu0 %v96
    %v562 = vpop.f32.mrb[0].mxu0
    %v563 = vadd.f32 %v156, %v562
    %v564 = vpop.f32.mrb[0].mxu0
    %v565 = vadd.f32 %v160, %v564
    %v566 = vpop.f32.mrb[0].mxu0
    %v567 = vadd.f32 %v156, %v566
    %v568 = vpop.f32.mrb[0].mxu0
    %v569 = vadd.f32 %v160, %v568
    %570 = vmatprep.mubr.bf16.mxu0 0
    %571 = vmatmul.mubr.bf16.gmra.mrb[0].mxu0 %v97
    %v572 = vpop.f32.mrb[0].mxu0
    %v573 = vadd.f32 %v156, %v572
    %v574 = vpop.f32.mrb[0].mxu0
    %v575 = vadd.f32 %v160, %v574
    %v576 = vpop.f32.mrb[0].mxu0
    %v577 = vadd.f32 %v156, %v576
    %v578 = vpop.f32.mrb[0].mxu0
    %v579 = vadd.f32 %v160, %v578
    %580 = vmatprep.mubr.bf16.mxu0 0
    %581 = vmatmul.mubr.bf16.gmra.mrb[0].mxu0 %v98
    %v582 = vpop.f32.mrb[0].mxu0
    %v583 = vadd.f32 %v156, %v582
    %v584 = vpop.f32.mrb[0].mxu0
    %v585 = vadd.f32 %v160, %v584
    %v586 = vpop.f32.mrb[0].mxu0
    %v587 = vadd.f32 %v156, %v586
    %v588 = vpop.f32.mrb[0].mxu0
    %v589 = vadd.f32 %v160, %v588
    %590 = vmatprep.mubr.bf16.mxu0 0
    %591 = vmatmul.mubr.bf16.gmra.mrb[0].mxu0 %v99
    %v592 = vpop.f32.mrb[0].mxu0
    %v593 = vadd.f32 %v156, %v592
    %v594 = vpop.f32.mrb[0].mxu0
    %v595 = vadd.f32 %v160, %v594
    %v596 = vpop.f32.mrb[0].mxu0
    %v597 = vadd.f32 %v156, %v596
    %v598 = vpop.f32.mrb[0].mxu0
    %v599 = vadd.f32 %v160, %v598
    %600 = vmatprep.mubr.bf16.mxu0 0
    %601 = vmatmul.mubr.bf16.gmra.mrb[0].mxu0 %v100
    %v602 = vpop.f32.mrb[0].mxu0
    %v603 = vadd.f32 %v156, %v602
    %v604 = vpop.f32.mrb[0].mxu0
    %v605 = vadd.f32 %v160, %v604
    %v606 = vpop.f32.mrb[0].mxu0
    %v607 = vadd.f32 %v156, %v606
    %v608 = vpop.f32.mrb[0].mxu0
    %v609 = vadd.f32 %v160, %v608
    %610 = vmatprep.mubr.bf16.mxu0 0
    %611 = vmatmul.mubr.bf16.gmra.mrb[0].mxu0 %v101
    %v612 = vpop.f32.mrb[0].mxu0
    %v613 = vadd.f32 %v156, %v612
    %v614 = vpop.f32.mrb[0].mxu0
    %v615 = vadd.f32 %v160, %v614
    %v616 = vpop.f32.mrb[0].mxu0
    %v617 = vadd.f32 %v156, %v616
    %v618 = vpop.f32.mrb[0].mxu0
    %v619 = vadd.f32 %v160, %v618
    %620 = vmatprep.mubr.bf16.mxu0 0
    %621 = vmatmul.mubr.bf16.gmra.mrb[0].mxu0 %v102
    %v622 = vpop.f32.mrb[0].mxu0
    %v623 = vadd.f32 %v156, %v622
    %v624 = vpop.f32.mrb[0].mxu0
    %v625 = vadd.f32 %v160, %v624
    %v626 = vpop.f32.mrb[0].mxu0
    %v627 = vadd.f32 %v156, %v626
    %v628 = vpop.f32.mrb[0].mxu0
    %v629 = vadd.f32 %v160, %v628
    %630 = vmatprep.mubr.bf16.mxu0 0
    %631 = vmatmul.mubr.bf16.gmra.mrb[0].mxu0 %v103
    %v632 = vpop.f32.mrb[0].mxu0
    %v633 = vadd.f32 %v156, %v632
    %v634 = vpop.f32.mrb[0].mxu0
    %v635 = vadd.f32 %v160, %v634
    %v636 = vpop.f32.mrb[0].mxu0
    %v637 = vadd.f32 %v156, %v636
    %v638 = vpop.f32.mrb[0].mxu0
    %v639 = vadd.f32 %v160, %v638
    %640 = vmatprep.mubr.bf16.mxu0 0
    %641 = vmatmul.mubr.bf16.gmra.mrb[0].mxu0 %v104
    %v642 = vpop.f32.mrb[0].mxu0
    %v643 = vadd.f32 %v156, %v642
    %v644 = vpop.f32.mrb[0].mxu0
    %v645 = vadd.f32 %v160, %v644
    %v646 = vpop.f32.mrb[0].mxu0
    %v647 = vadd.f32 %v156, %v646
    %v648 = vpop.f32.mrb[0].mxu0
    %v649 = vadd.f32 %v160, %v648
    %650 = vmatprep.mubr.bf16.mxu0 0
    %651 = vmatmul.mubr.bf16.gmra.mrb[0].mxu0 %v105
    %v652 = vpop.f32.mrb[0].mxu0
    %v653 = vadd.f32 %v156, %v652
    %v654 = vpop.f32.mrb[0].mxu0
    %v655 = vadd.f32 %v160, %v654
    %v656 = vpop.f32.mrb[0].mxu0
    %v657 = vadd.f32 %v156, %v656
    %v658 = vpop.f32.mrb[0].mxu0
    %v659 = vadd.f32 %v160, %v658
    %660 = vmatprep.mubr.bf16.mxu0 0
    %661 = vmatmul.mubr.bf16.gmra.mrb[0].mxu0 %v106
    %v662 = vpop.f32.mrb[0].mxu0
    %v663 = vadd.f32 %v156, %v662
    %v664 = vpop.f32.mrb[0].mxu0
    %v665 = vadd.f32 %v160, %v664
    %v666 = vpop.f32.mrb[0].mxu0
    %v667 = vadd.f32 %v156, %v666
    %v668 = vpop.f32.mrb[0].mxu0
    %v669 = vadd.f32 %v160, %v668
    %670 = vmatprep.mubr.bf16.mxu0 0
    %671 = vmatmul.mubr.bf16.gmra.mrb[0].mxu0 %v107
    %v672 = vpop.f32.mrb[0].mxu0
    %v673 = vadd.f32 %v156, %v672
    %v674 = vpop.f32.mrb[0].mxu0
    %v675 = vadd.f32 %v160, %v674
    %v676 = vpop.f32.mrb[0].mxu0
    %v677 = vadd.f32 %v156, %v676
    %v678 = vpop.f32.mrb[0].mxu0
    %v679 = vadd.f32 %v160, %v678
    %680 = vmatprep.mubr.bf16.mxu0 0
    %681 = vmatmul.mubr.bf16.gmra.mrb[0].mxu0 %v108
    %v682 = vpop.f32.mrb[0].mxu0
    %v683 = vadd.f32 %v156, %v682
    %v684 = vpop.f32.mrb[0].mxu0
    %v685 = vadd.f32 %v160, %v684
    %v686 = vpop.f32.mrb[0].mxu0
    %v687 = vadd.f32 %v156, %v686
    %v688 = vpop.f32.mrb[0].mxu0
    %v689 = vadd.f32 %v160, %v688
    %690 = vmatprep.mubr.bf16.mxu0 0
    %691 = vmatmul.mubr.bf16.gmra.mrb[0].mxu0 %v109
    %v692 = vpop.f32.mrb[0].mxu0
    %v693 = vadd.f32 %v156, %v692
    %v694 = vpop.f32.mrb[0].mxu0
    %v695 = vadd.f32 %v160, %v694
    %v696 = vpop.f32.mrb[0].mxu0
    %v697 = vadd.f32 %v156, %v696
    %v698 = vpop.f32.mrb[0].mxu0
    %v699 = vadd.f32 %v160, %v698
    %700 = vmatprep.mubr.bf16.mxu0 0
    %701 = vmatmul.mubr.bf16.gmra.mrb[0].mxu0 %v110
    %v702 = vpop.f32.mrb[0].mxu0
    %v703 = vadd.f32 %v156, %v702
    %v704 = vpop.f32.mrb[0].mxu0
    %v705 = vadd.f32 %v160, %v704
    %v706 = vpop.f32.mrb[0].mxu0
    %v707 = vadd.f32 %v156, %v706
    %v708 = vpop.f32.mrb[0].mxu0
    %v709 = vadd.f32 %v160, %v708
    %710 = vdwg.mxu0
    %v711 = vmax.f32 %v360, 0.0
    %v712 = vmax.f32 %v362, 0.0
    %v713 = vmax.f32 %v553, 0.0
    %v714 = vmax.f32 %v555, 0.0
    %v715 = vmax.f32 %v364, 0.0
    %v716 = vmax.f32 %v366, 0.0
    %v717 = vmax.f32 %v557, 0.0
    %v718 = vmax.f32 %v559, 0.0
    %v719 = vmax.f32 %v370, 0.0
    %v720 = vmax.f32 %v372, 0.0
    %v721 = vmax.f32 %v563, 0.0
    %v722 = vmax.f32 %v565, 0.0
    %v723 = vmax.f32 %v374, 0.0
    %v724 = vmax.f32 %v376, 0.0
    %v725 = vmax.f32 %v567, 0.0
    %v726 = vmax.f32 %v569, 0.0
    %v727 = vmax.f32 %v380, 0.0
    %v728 = vmax.f32 %v382, 0.0
    %v729 = vmax.f32 %v573, 0.0
    %v730 = vmax.f32 %v575, 0.0
    %v731 = vmax.f32 %v384, 0.0
    %v732 = vmax.f32 %v386, 0.0
    %v733 = vmax.f32 %v577, 0.0
    %v734 = vmax.f32 %v579, 0.0
    %v735 = vmax.f32 %v390, 0.0
    %v736 = vmax.f32 %v392, 0.0
    %v737 = vmax.f32 %v583, 0.0
    %v738 = vmax.f32 %v585, 0.0
    %v739 = vmax.f32 %v394, 0.0
    %v740 = vmax.f32 %v396, 0.0
    %v741 = vmax.f32 %v587, 0.0
    %v742 = vmax.f32 %v589, 0.0
    %v743 = vmax.f32 %v400, 0.0
    %v744 = vmax.f32 %v402, 0.0
    %v745 = vmax.f32 %v593, 0.0
    %v746 = vmax.f32 %v595, 0.0
    %v747 = vmax.f32 %v404, 0.0
    %v748 = vmax.f32 %v406, 0.0
    %v749 = vmax.f32 %v597, 0.0
    %v750 = vmax.f32 %v599, 0.0
    %v751 = vmax.f32 %v410, 0.0
    %v752 = vmax.f32 %v412, 0.0
    %v753 = vmax.f32 %v603, 0.0
    %v754 = vmax.f32 %v605, 0.0
    %v755 = vmax.f32 %v414, 0.0
    %v756 = vmax.f32 %v416, 0.0
    %v757 = vmax.f32 %v607, 0.0
    %v758 = vmax.f32 %v609, 0.0
    %v759 = vmax.f32 %v420, 0.0
    %v760 = vmax.f32 %v422, 0.0
    %v761 = vmax.f32 %v613, 0.0
    %v762 = vmax.f32 %v615, 0.0
    %v763 = vmax.f32 %v424, 0.0
    %v764 = vmax.f32 %v426, 0.0
    %v765 = vmax.f32 %v617, 0.0
    %v766 = vmax.f32 %v619, 0.0
    %v767 = vmax.f32 %v430, 0.0
    %v768 = vmax.f32 %v432, 0.0
    %v769 = vmax.f32 %v623, 0.0
    %v770 = vmax.f32 %v625, 0.0
    %v771 = vmax.f32 %v434, 0.0
    %v772 = vmax.f32 %v436, 0.0
    %v773 = vmax.f32 %v627, 0.0
    %v774 = vmax.f32 %v629, 0.0
    %v775 = vmax.f32 %v440, 0.0
    %v776 = vmax.f32 %v442, 0.0
    %v777 = vmax.f32 %v633, 0.0
    %v778 = vmax.f32 %v635, 0.0
    %v779 = vmax.f32 %v444, 0.0
    %v780 = vmax.f32 %v446, 0.0
    %v781 = vmax.f32 %v637, 0.0
    %v782 = vmax.f32 %v639, 0.0
    %v783 = vmax.f32 %v450, 0.0
    %v784 = vmax.f32 %v452, 0.0
    %v785 = vmax.f32 %v643, 0.0
    %v786 = vmax.f32 %v645, 0.0
    %v787 = vmax.f32 %v454, 0.0
    %v788 = vmax.f32 %v456, 0.0
    %v789 = vmax.f32 %v647, 0.0
    %v790 = vmax.f32 %v649, 0.0
    %v791 = vmax.f32 %v460, 0.0
    %v792 = vmax.f32 %v462, 0.0
    %v793 = vmax.f32 %v653, 0.0
    %v794 = vmax.f32 %v655, 0.0
    %v795 = vmax.f32 %v464, 0.0
    %v796 = vmax.f32 %v466, 0.0
    %v797 = vmax.f32 %v657, 0.0
    %v798 = vmax.f32 %v659, 0.0
    %v799 = vmax.f32 %v470, 0.0
    %v800 = vmax.f32 %v472, 0.0
    %v801 = vmax.f32 %v663, 0.0
    %v802 = vmax.f32 %v665, 0.0
    %v803 = vmax.f32 %v474, 0.0
    %v804 = vmax.f32 %v476, 0.0
    %v805 = vmax.f32 %v667, 0.0
    %v806 = vmax.f32 %v669, 0.0
    %v807 = vmax.f32 %v480, 0.0
    %v808 = vmax.f32 %v482, 0.0
    %v809 = vmax.f32 %v673, 0.0
    %v810 = vmax.f32 %v675, 0.0
    %v811 = vmax.f32 %v484, 0.0
    %v812 = vmax.f32 %v486, 0.0
    %v813 = vmax.f32 %v677, 0.0
    %v814 = vmax.f32 %v679, 0.0
    %v815 = vmax.f32 %v490, 0.0
    %v816 = vmax.f32 %v492, 0.0
    %v817 = vmax.f32 %v683, 0.0
    %v818 = vmax.f32 %v685, 0.0
    %v819 = vmax.f32 %v494, 0.0
    %v820 = vmax.f32 %v496, 0.0
    %v821 = vmax.f32 %v687, 0.0
    %v822 = vmax.f32 %v689, 0.0
    %v823 = vmax.f32 %v500, 0.0
    %v824 = vmax.f32 %v502, 0.0
    %v825 = vmax.f32 %v693, 0.0
    %v826 = vmax.f32 %v695, 0.0
    %v827 = vmax.f32 %v504, 0.0
    %v828 = vmax.f32 %v506, 0.0
    %v829 = vmax.f32 %v697, 0.0
    %v830 = vmax.f32 %v699, 0.0
    %v831 = vmax.f32 %v510, 0.0
    %v832 = vmax.f32 %v512, 0.0
    %v833 = vmax.f32 %v703, 0.0
    %v834 = vmax.f32 %v705, 0.0
    %v835 = vmax.f32 %v514, 0.0
    %v836 = vmax.f32 %v516, 0.0
    %v837 = vmax.f32 %v707, 0.0
    %v838 = vmax.f32 %v709, 0.0
    %v839 = vpack.c.bf16 %v715, %v711
    %v840 = vpack.c.bf16 %v716, %v712
    %v841 = vpack.c.bf16 %v717, %v713
    %v842 = vpack.c.bf16 %v718, %v714
    %v843 = vpack.c.bf16 %v723, %v719
    %v844 = vpack.c.bf16 %v724, %v720
    %v845 = vpack.c.bf16 %v725, %v721
    %v846 = vpack.c.bf16 %v726, %v722
    %v847 = vpack.c.bf16 %v731, %v727
    %v848 = vpack.c.bf16 %v732, %v728
    %v849 = vpack.c.bf16 %v733, %v729
    %v850 = vpack.c.bf16 %v734, %v730
    %v851 = vpack.c.bf16 %v739, %v735
    %v852 = vpack.c.bf16 %v740, %v736
    %v853 = vpack.c.bf16 %v741, %v737
    %v854 = vpack.c.bf16 %v742, %v738
    %v855 = vpack.c.bf16 %v747, %v743
    %v856 = vpack.c.bf16 %v748, %v744
    %v857 = vpack.c.bf16 %v749, %v745
    %v858 = vpack.c.bf16 %v750, %v746
    %v859 = vpack.c.bf16 %v755, %v751
    %v860 = vpack.c.bf16 %v756, %v752
    %v861 = vpack.c.bf16 %v757, %v753
    %v862 = vpack.c.bf16 %v758, %v754
    %v863 = vpack.c.bf16 %v763, %v759
    %v864 = vpack.c.bf16 %v764, %v760
    %v865 = vpack.c.bf16 %v765, %v761
    %v866 = vpack.c.bf16 %v766, %v762
    %v867 = vpack.c.bf16 %v771, %v767
    %v868 = vpack.c.bf16 %v772, %v768
    %v869 = vpack.c.bf16 %v773, %v769
    %v870 = vpack.c.bf16 %v774, %v770
    %v871 = vpack.c.bf16 %v779, %v775
    %v872 = vpack.c.bf16 %v780, %v776
    %v873 = vpack.c.bf16 %v781, %v777
    %v874 = vpack.c.bf16 %v782, %v778
    %v875 = vpack.c.bf16 %v787, %v783
    %v876 = vpack.c.bf16 %v788, %v784
    %v877 = vpack.c.bf16 %v789, %v785
    %v878 = vpack.c.bf16 %v790, %v786
    %v879 = vpack.c.bf16 %v795, %v791
    %v880 = vpack.c.bf16 %v796, %v792
    %v881 = vpack.c.bf16 %v797, %v793
    %v882 = vpack.c.bf16 %v798, %v794
    %v883 = vpack.c.bf16 %v803, %v799
    %v884 = vpack.c.bf16 %v804, %v800
    %v885 = vpack.c.bf16 %v805, %v801
    %v886 = vpack.c.bf16 %v806, %v802
    %v887 = vpack.c.bf16 %v811, %v807
    %v888 = vpack.c.bf16 %v812, %v808
    %v889 = vpack.c.bf16 %v813, %v809
    %v890 = vpack.c.bf16 %v814, %v810
    %v891 = vpack.c.bf16 %v819, %v815
    %v892 = vpack.c.bf16 %v820, %v816
    %v893 = vpack.c.bf16 %v821, %v817
    %v894 = vpack.c.bf16 %v822, %v818
    %v895 = vpack.c.bf16 %v827, %v823
    %v896 = vpack.c.bf16 %v828, %v824
    %v897 = vpack.c.bf16 %v829, %v825
    %v898 = vpack.c.bf16 %v830, %v826
    %v899 = vpack.c.bf16 %v835, %v831
    %v900 = vpack.c.bf16 %v836, %v832
    %v901 = vpack.c.bf16 %v837, %v833
    %v902 = vpack.c.bf16 %v838, %v834
    %v903 = vld [vmem:[#allocation7] sm:$0xf]
    %v904 = vld [vmem:[#allocation7 + $0x4] sm:$0xf]
    %v905 = vld [vmem:[#allocation7 + $0x8] sm:$0xf]
    %v906 = vld [vmem:[#allocation7 + $0xc] sm:$0xf]
    %v907 = vld [vmem:[#allocation7 + $0x10] sm:$0xf]
    %v908 = vld [vmem:[#allocation7 + $0x14] sm:$0xf]
    %v909 = vld [vmem:[#allocation7 + $0x18] sm:$0xf]
    %v910 = vld [vmem:[#allocation7 + $0x1c] sm:$0xf]
    %v911 = vld [vmem:[#allocation7 + $0x20] sm:$0xf]
    %v912 = vld [vmem:[#allocation7 + $0x24] sm:$0xf]
    %v913 = vld [vmem:[#allocation7 + $0x28] sm:$0xf]
    %v914 = vld [vmem:[#allocation7 + $0x2c] sm:$0xf]
    %v915 = vld [vmem:[#allocation7 + $0x30] sm:$0xf]
    %v916 = vld [vmem:[#allocation7 + $0x34] sm:$0xf]
    %v917 = vld [vmem:[#allocation7 + $0x38] sm:$0xf]
    %v918 = vld [vmem:[#allocation7 + $0x3c] sm:$0xf]
    %v919 = vld [vmem:[#allocation7 + $0x40] sm:$0xf]
    %v920 = vld [vmem:[#allocation7 + $0x44] sm:$0xf]
    %v921 = vld [vmem:[#allocation7 + $0x48] sm:$0xf]
    %v922 = vld [vmem:[#allocation7 + $0x4c] sm:$0xf]
    %v923 = vld [vmem:[#allocation7 + $0x50] sm:$0xf]
    %v924 = vld [vmem:[#allocation7 + $0x54] sm:$0xf]
    %v925 = vld [vmem:[#allocation7 + $0x58] sm:$0xf]
    %v926 = vld [vmem:[#allocation7 + $0x5c] sm:$0xf]
    %v927 = vld [vmem:[#allocation7 + $0x60] sm:$0xf]
    %v928 = vld [vmem:[#allocation7 + $0x64] sm:$0xf]
    %v929 = vld [vmem:[#allocation7 + $0x68] sm:$0xf]
    %v930 = vld [vmem:[#allocation7 + $0x6c] sm:$0xf]
    %v931 = vld [vmem:[#allocation7 + $0x70] sm:$0xf]
    %v932 = vld [vmem:[#allocation7 + $0x74] sm:$0xf]
    %v933 = vld [vmem:[#allocation7 + $0x78] sm:$0xf]
    %v934 = vld [vmem:[#allocation7 + $0x7c] sm:$0xf]
    %v935 = vld [vmem:[#allocation7 + $0x80] sm:$0xf]
    %v936 = vld [vmem:[#allocation7 + $0x84] sm:$0xf]
    %v937 = vld [vmem:[#allocation7 + $0x88] sm:$0xf]
    %v938 = vld [vmem:[#allocation7 + $0x8c] sm:$0xf]
    %v939 = vld [vmem:[#allocation7 + $0x90] sm:$0xf]
    %v940 = vld [vmem:[#allocation7 + $0x94] sm:$0xf]
    %v941 = vld [vmem:[#allocation7 + $0x98] sm:$0xf]
    %v942 = vld [vmem:[#allocation7 + $0x9c] sm:$0xf]
    %v943 = vld [vmem:[#allocation7 + $0xa0] sm:$0xf]
    %v944 = vld [vmem:[#allocation7 + $0xa4] sm:$0xf]
    %v945 = vld [vmem:[#allocation7 + $0xa8] sm:$0xf]
    %v946 = vld [vmem:[#allocation7 + $0xac] sm:$0xf]
    %v947 = vld [vmem:[#allocation7 + $0xb0] sm:$0xf]
    %v948 = vld [vmem:[#allocation7 + $0xb4] sm:$0xf]
    %v949 = vld [vmem:[#allocation7 + $0xb8] sm:$0xf]
    %v950 = vld [vmem:[#allocation7 + $0xbc] sm:$0xf]
    %v951 = vld [vmem:[#allocation7 + $0xc0] sm:$0xf]
    %v952 = vld [vmem:[#allocation7 + $0xc4] sm:$0xf]
    %v953 = vld [vmem:[#allocation7 + $0xc8] sm:$0xf]
    %v954 = vld [vmem:[#allocation7 + $0xcc] sm:$0xf]
    %v955 = vld [vmem:[#allocation7 + $0xd0] sm:$0xf]
    %v956 = vld [vmem:[#allocation7 + $0xd4] sm:$0xf]
    %v957 = vld [vmem:[#allocation7 + $0xd8] sm:$0xf]
    %v958 = vld [vmem:[#allocation7 + $0xdc] sm:$0xf]
    %v959 = vld [vmem:[#allocation7 + $0xe0] sm:$0xf]
    %v960 = vld [vmem:[#allocation7 + $0xe4] sm:$0xf]
    %v961 = vld [vmem:[#allocation7 + $0xe8] sm:$0xf]
    %v962 = vld [vmem:[#allocation7 + $0xec] sm:$0xf]
    %v963 = vld [vmem:[#allocation7 + $0xf0] sm:$0xf]
    %v964 = vld [vmem:[#allocation7 + $0xf4] sm:$0xf]
    %v965 = vld [vmem:[#allocation7 + $0xf8] sm:$0xf]
    %v966 = vld [vmem:[#allocation7 + $0xfc] sm:$0xf]
    %v967 = vld [vmem:[%s4] sm:$0x1]
    %v969 = vlaneseq
    %v970 = vshrl.u32 %v969, 7
    %v971 = vsub.s32 0, %v970
    %v972 = vrot.slane %v967, %v971
    %v1038 = vunpack.c.l.b16 %v903
    %v1039 = vunpack.c.l.b16 %v904
    %v1040 = vunpack.c.l.b16 %v905
    %v1041 = vunpack.c.l.b16 %v906
    %v1042 = vunpack.c.l.b16 %v907
    %v1043 = vunpack.c.l.b16 %v908
    %v1044 = vunpack.c.l.b16 %v909
    %v1045 = vunpack.c.l.b16 %v910
    %v1046 = vunpack.c.l.b16 %v911
    %v1047 = vunpack.c.l.b16 %v912
    %v1048 = vunpack.c.l.b16 %v913
    %v1049 = vunpack.c.l.b16 %v914
    %v1050 = vunpack.c.l.b16 %v915
    %v1051 = vunpack.c.l.b16 %v916
    %v1052 = vunpack.c.l.b16 %v917
    %v1053 = vunpack.c.l.b16 %v918
    %v1054 = vunpack.c.l.b16 %v919
    %v1055 = vunpack.c.l.b16 %v920
    %v1056 = vunpack.c.l.b16 %v921
    %v1057 = vunpack.c.l.b16 %v922
    %v1058 = vunpack.c.l.b16 %v923
    %v1059 = vunpack.c.l.b16 %v924
    %v1060 = vunpack.c.l.b16 %v925
    %v1061 = vunpack.c.l.b16 %v926
    %v1062 = vunpack.c.l.b16 %v927
    %v1063 = vunpack.c.l.b16 %v928
    %v1064 = vunpack.c.l.b16 %v929
    %v1065 = vunpack.c.l.b16 %v930
    %v1066 = vunpack.c.l.b16 %v931
    %v1067 = vunpack.c.l.b16 %v932
    %v1068 = vunpack.c.l.b16 %v933
    %v1069 = vunpack.c.l.b16 %v934
    %v1070 = vunpack.c.l.b16 %v935
    %v1071 = vunpack.c.l.b16 %v936
    %v1072 = vunpack.c.l.b16 %v937
    %v1073 = vunpack.c.l.b16 %v938
    %v1074 = vunpack.c.l.b16 %v939
    %v1075 = vunpack.c.l.b16 %v940
    %v1076 = vunpack.c.l.b16 %v941
    %v1077 = vunpack.c.l.b16 %v942
    %v1078 = vunpack.c.l.b16 %v943
    %v1079 = vunpack.c.l.b16 %v944
    %v1080 = vunpack.c.l.b16 %v945
    %v1081 = vunpack.c.l.b16 %v946
    %v1082 = vunpack.c.l.b16 %v947
    %v1083 = vunpack.c.l.b16 %v948
    %v1084 = vunpack.c.l.b16 %v949
    %v1085 = vunpack.c.l.b16 %v950
    %v1086 = vunpack.c.l.b16 %v951
    %v1087 = vunpack.c.l.b16 %v952
    %v1088 = vunpack.c.l.b16 %v953
    %v1089 = vunpack.c.l.b16 %v954
    %v1090 = vunpack.c.l.b16 %v955
    %v1091 = vunpack.c.l.b16 %v956
    %v1092 = vunpack.c.l.b16 %v957
    %v1093 = vunpack.c.l.b16 %v958
    %v1094 = vunpack.c.l.b16 %v959
    %v1095 = vunpack.c.l.b16 %v960
    %v1096 = vunpack.c.l.b16 %v961
    %v1097 = vunpack.c.l.b16 %v962
    %v1098 = vunpack.c.l.b16 %v963
    %v1099 = vunpack.c.l.b16 %v964
    %v1100 = vunpack.c.l.b16 %v965
    %v1101 = vunpack.c.l.b16 %v966
    %v1102 = vpack.c.b16 %v1039, %v1038
    %v1103 = vpack.c.b16 %v1041, %v1040
    %v1104 = vpack.c.b16 %v1043, %v1042
    %v1105 = vpack.c.b16 %v1045, %v1044
    %v1106 = vpack.c.b16 %v1047, %v1046
    %v1107 = vpack.c.b16 %v1049, %v1048
    %v1108 = vpack.c.b16 %v1051, %v1050
    %v1109 = vpack.c.b16 %v1053, %v1052
    %v1110 = vpack.c.b16 %v1055, %v1054
    %v1111 = vpack.c.b16 %v1057, %v1056
    %v1112 = vpack.c.b16 %v1059, %v1058
    %v1113 = vpack.c.b16 %v1061, %v1060
    %v1114 = vpack.c.b16 %v1063, %v1062
    %v1115 = vpack.c.b16 %v1065, %v1064
    %v1116 = vpack.c.b16 %v1067, %v1066
    %v1117 = vpack.c.b16 %v1069, %v1068
    %v1118 = vpack.c.b16 %v1071, %v1070
    %v1119 = vpack.c.b16 %v1073, %v1072
    %v1120 = vpack.c.b16 %v1075, %v1074
    %v1121 = vpack.c.b16 %v1077, %v1076
    %v1122 = vpack.c.b16 %v1079, %v1078
    %v1123 = vpack.c.b16 %v1081, %v1080
    %v1124 = vpack.c.b16 %v1083, %v1082
    %v1125 = vpack.c.b16 %v1085, %v1084
    %v1126 = vpack.c.b16 %v1087, %v1086
    %v1127 = vpack.c.b16 %v1089, %v1088
    %v1128 = vpack.c.b16 %v1091, %v1090
    %v1129 = vpack.c.b16 %v1093, %v1092
    %v1130 = vpack.c.b16 %v1095, %v1094
    %v1131 = vpack.c.b16 %v1097, %v1096
    %v1132 = vpack.c.b16 %v1099, %v1098
    %v1133 = vpack.c.b16 %v1101, %v1100
    %1166 = vmatprep.subr.bf16.mxu0 0
    %1167 = vmatpush1.bf16.msra.mxu0 %v1102
    %1168 = vmatprep.subr.bf16.mxu0 0
    %1169 = vmatpush1.bf16.msra.mxu0 %v1103
    %1170 = vmatprep.subr.bf16.mxu0 0
    %1171 = vmatpush1.bf16.msra.mxu0 %v1104
    %1172 = vmatprep.subr.bf16.mxu0 0
    %1173 = vmatpush1.bf16.msra.mxu0 %v1105
    %1174 = vmatprep.subr.bf16.mxu0 0
    %1175 = vmatpush1.bf16.msra.mxu0 %v1106
    %1176 = vmatprep.subr.bf16.mxu0 0
    %1177 = vmatpush1.bf16.msra.mxu0 %v1107
    %1178 = vmatprep.subr.bf16.mxu0 0
    %1179 = vmatpush1.bf16.msra.mxu0 %v1108
    %1180 = vmatprep.subr.bf16.mxu0 0
    %1181 = vmatpush1.bf16.msra.mxu0 %v1109
    %1182 = vmatprep.subr.bf16.mxu0 0
    %1183 = vmatpush1.bf16.msra.mxu0 %v1110
    %1184 = vmatprep.subr.bf16.mxu0 0
    %1185 = vmatpush1.bf16.msra.mxu0 %v1111
    %1186 = vmatprep.subr.bf16.mxu0 0
    %1187 = vmatpush1.bf16.msra.mxu0 %v1112
    %1188 = vmatprep.subr.bf16.mxu0 0
    %1189 = vmatpush1.bf16.msra.mxu0 %v1113
    %1190 = vmatprep.subr.bf16.mxu0 0
    %1191 = vmatpush1.bf16.msra.mxu0 %v1114
    %1192 = vmatprep.subr.bf16.mxu0 0
    %1193 = vmatpush1.bf16.msra.mxu0 %v1115
    %1194 = vmatprep.subr.bf16.mxu0 0
    %1195 = vmatpush1.bf16.msra.mxu0 %v1116
    %1196 = vmatprep.subr.bf16.mxu0 0
    %1197 = vmatpush1.bf16.msra.mxu0 %v1117
    %1198 = vmatprep.mubr.bf16.mxu0 %v840
    %1199 = vmatmul.mubr.bf16.gmra.mrb[0].mxu0 %v839
    %v1200 = vpop.f32.mrb[0].mxu0
    %v1201 = vadd.f32 %v972, %v1200
    %v1202 = vpop.f32.mrb[0].mxu0
    %v1203 = vpop.f32.mrb[0].mxu0
    %v1204 = vadd.f32 %v972, %v1203
    %v1205 = vpop.f32.mrb[0].mxu0
    %1206 = vmatprep.mubr.bf16.mxu0 %v844
    %1207 = vmatmul.mubr.bf16.gmra.mrb[0].mxu0 %v843
    %v1208 = vpop.f32.mrb[0].mxu0
    %v1209 = vadd.f32 %v972, %v1208
    %v1210 = vpop.f32.mrb[0].mxu0
    %v1211 = vpop.f32.mrb[0].mxu0
    %v1212 = vadd.f32 %v972, %v1211
    %v1213 = vpop.f32.mrb[0].mxu0
    %1214 = vmatprep.mubr.bf16.mxu0 %v848
    %1215 = vmatmul.mubr.bf16.gmra.mrb[0].mxu0 %v847
    %v1216 = vpop.f32.mrb[0].mxu0
    %v1217 = vadd.f32 %v972, %v1216
    %v1218 = vpop.f32.mrb[0].mxu0
    %v1219 = vpop.f32.mrb[0].mxu0
    %v1220 = vadd.f32 %v972, %v1219
    %v1221 = vpop.f32.mrb[0].mxu0
    %1222 = vmatprep.mubr.bf16.mxu0 %v852
    %1223 = vmatmul.mubr.bf16.gmra.mrb[0].mxu0 %v851
    %v1224 = vpop.f32.mrb[0].mxu0
    %v1225 = vadd.f32 %v972, %v1224
    %v1226 = vpop.f32.mrb[0].mxu0
    %v1227 = vpop.f32.mrb[0].mxu0
    %v1228 = vadd.f32 %v972, %v1227
    %v1229 = vpop.f32.mrb[0].mxu0
    %1230 = vmatprep.mubr.bf16.mxu0 %v856
    %1231 = vmatmul.mubr.bf16.gmra.mrb[0].mxu0 %v855
    %v1232 = vpop.f32.mrb[0].mxu0
    %v1233 = vadd.f32 %v972, %v1232
    %v1234 = vpop.f32.mrb[0].mxu0
    %v1235 = vpop.f32.mrb[0].mxu0
    %v1236 = vadd.f32 %v972, %v1235
    %v1237 = vpop.f32.mrb[0].mxu0
    %1238 = vmatprep.mubr.bf16.mxu0 %v860
    %1239 = vmatmul.mubr.bf16.gmra.mrb[0].mxu0 %v859
    %v1240 = vpop.f32.mrb[0].mxu0
    %v1241 = vadd.f32 %v972, %v1240
    %v1242 = vpop.f32.mrb[0].mxu0
    %v1243 = vpop.f32.mrb[0].mxu0
    %v1244 = vadd.f32 %v972, %v1243
    %v1245 = vpop.f32.mrb[0].mxu0
    %1246 = vmatprep.mubr.bf16.mxu0 %v864
    %1247 = vmatmul.mubr.bf16.gmra.mrb[0].mxu0 %v863
    %v1248 = vpop.f32.mrb[0].mxu0
    %v1249 = vadd.f32 %v972, %v1248
    %v1250 = vpop.f32.mrb[0].mxu0
    %v1251 = vpop.f32.mrb[0].mxu0
    %v1252 = vadd.f32 %v972, %v1251
    %v1253 = vpop.f32.mrb[0].mxu0
    %1254 = vmatprep.mubr.bf16.mxu0 %v868
    %1255 = vmatmul.mubr.bf16.gmra.mrb[0].mxu0 %v867
    %v1256 = vpop.f32.mrb[0].mxu0
    %v1257 = vadd.f32 %v972, %v1256
    %v1258 = vpop.f32.mrb[0].mxu0
    %v1259 = vpop.f32.mrb[0].mxu0
    %v1260 = vadd.f32 %v972, %v1259
    %v1261 = vpop.f32.mrb[0].mxu0
    %1262 = vmatprep.mubr.bf16.mxu0 %v872
    %1263 = vmatmul.mubr.bf16.gmra.mrb[0].mxu0 %v871
    %v1264 = vpop.f32.mrb[0].mxu0
    %v1265 = vadd.f32 %v972, %v1264
    %v1266 = vpop.f32.mrb[0].mxu0
    %v1267 = vpop.f32.mrb[0].mxu0
    %v1268 = vadd.f32 %v972, %v1267
    %v1269 = vpop.f32.mrb[0].mxu0
    %1270 = vmatprep.mubr.bf16.mxu0 %v876
    %1271 = vmatmul.mubr.bf16.gmra.mrb[0].mxu0 %v875
    %v1272 = vpop.f32.mrb[0].mxu0
    %v1273 = vadd.f32 %v972, %v1272
    %v1274 = vpop.f32.mrb[0].mxu0
    %v1275 = vpop.f32.mrb[0].mxu0
    %v1276 = vadd.f32 %v972, %v1275
    %v1277 = vpop.f32.mrb[0].mxu0
    %1278 = vmatprep.mubr.bf16.mxu0 %v880
    %1279 = vmatmul.mubr.bf16.gmra.mrb[0].mxu0 %v879
    %v1280 = vpop.f32.mrb[0].mxu0
    %v1281 = vadd.f32 %v972, %v1280
    %v1282 = vpop.f32.mrb[0].mxu0
    %v1283 = vpop.f32.mrb[0].mxu0
    %v1284 = vadd.f32 %v972, %v1283
    %v1285 = vpop.f32.mrb[0].mxu0
    %1286 = vmatprep.mubr.bf16.mxu0 %v884
    %1287 = vmatmul.mubr.bf16.gmra.mrb[0].mxu0 %v883
    %v1288 = vpop.f32.mrb[0].mxu0
    %v1289 = vadd.f32 %v972, %v1288
    %v1290 = vpop.f32.mrb[0].mxu0
    %v1291 = vpop.f32.mrb[0].mxu0
    %v1292 = vadd.f32 %v972, %v1291
    %v1293 = vpop.f32.mrb[0].mxu0
    %1294 = vmatprep.mubr.bf16.mxu0 %v888
    %1295 = vmatmul.mubr.bf16.gmra.mrb[0].mxu0 %v887
    %v1296 = vpop.f32.mrb[0].mxu0
    %v1297 = vadd.f32 %v972, %v1296
    %v1298 = vpop.f32.mrb[0].mxu0
    %v1299 = vpop.f32.mrb[0].mxu0
    %v1300 = vadd.f32 %v972, %v1299
    %v1301 = vpop.f32.mrb[0].mxu0
    %1302 = vmatprep.mubr.bf16.mxu0 %v892
    %1303 = vmatmul.mubr.bf16.gmra.mrb[0].mxu0 %v891
    %v1304 = vpop.f32.mrb[0].mxu0
    %v1305 = vadd.f32 %v972, %v1304
    %v1306 = vpop.f32.mrb[0].mxu0
    %v1307 = vpop.f32.mrb[0].mxu0
    %v1308 = vadd.f32 %v972, %v1307
    %v1309 = vpop.f32.mrb[0].mxu0
    %1310 = vmatprep.mubr.bf16.mxu0 %v896
    %1311 = vmatmul.mubr.bf16.gmra.mrb[0].mxu0 %v895
    %v1312 = vpop.f32.mrb[0].mxu0
    %v1313 = vadd.f32 %v972, %v1312
    %v1314 = vpop.f32.mrb[0].mxu0
    %v1315 = vpop.f32.mrb[0].mxu0
    %v1316 = vadd.f32 %v972, %v1315
    %v1317 = vpop.f32.mrb[0].mxu0
    %1318 = vmatprep.mubr.bf16.mxu0 %v900
    %1319 = vmatmul.mubr.bf16.gmra.mrb[0].mxu0 %v899
    %v1320 = vpop.f32.mrb[0].mxu0
    %v1321 = vadd.f32 %v972, %v1320
    %v1322 = vpop.f32.mrb[0].mxu0
    %v1323 = vpop.f32.mrb[0].mxu0
    %v1324 = vadd.f32 %v972, %v1323
    %v1325 = vpop.f32.mrb[0].mxu0
    %1326 = vdwg.mxu0
    %1327 = vmatprep.subr.bf16.mxu0 0
    %1328 = vmatpush1.bf16.msra.mxu0 %v1118
    %1329 = vmatprep.subr.bf16.mxu0 0
    %1330 = vmatpush1.bf16.msra.mxu0 %v1119
    %1331 = vmatprep.subr.bf16.mxu0 0
    %1332 = vmatpush1.bf16.msra.mxu0 %v1120
    %1333 = vmatprep.subr.bf16.mxu0 0
    %1334 = vmatpush1.bf16.msra.mxu0 %v1121
    %1335 = vmatprep.subr.bf16.mxu0 0
    %1336 = vmatpush1.bf16.msra.mxu0 %v1122
    %1337 = vmatprep.subr.bf16.mxu0 0
    %1338 = vmatpush1.bf16.msra.mxu0 %v1123
    %1339 = vmatprep.subr.bf16.mxu0 0
    %1340 = vmatpush1.bf16.msra.mxu0 %v1124
    %1341 = vmatprep.subr.bf16.mxu0 0
    %1342 = vmatpush1.bf16.msra.mxu0 %v1125
    %1343 = vmatprep.subr.bf16.mxu0 0
    %1344 = vmatpush1.bf16.msra.mxu0 %v1126
    %1345 = vmatprep.subr.bf16.mxu0 0
    %1346 = vmatpush1.bf16.msra.mxu0 %v1127
    %1347 = vmatprep.subr.bf16.mxu0 0
    %1348 = vmatpush1.bf16.msra.mxu0 %v1128
    %1349 = vmatprep.subr.bf16.mxu0 0
    %1350 = vmatpush1.bf16.msra.mxu0 %v1129
    %1351 = vmatprep.subr.bf16.mxu0 0
    %1352 = vmatpush1.bf16.msra.mxu0 %v1130
    %1353 = vmatprep.subr.bf16.mxu0 0
    %1354 = vmatpush1.bf16.msra.mxu0 %v1131
    %1355 = vmatprep.subr.bf16.mxu0 0
    %1356 = vmatpush1.bf16.msra.mxu0 %v1132
    %1357 = vmatprep.subr.bf16.mxu0 0
    %1358 = vmatpush1.bf16.msra.mxu0 %v1133
    %1359 = vmatprep.mubr.bf16.mxu0 %v842
    %1360 = vmatmul.mubr.bf16.gmra.mrb[0].mxu0 %v841
    %v1361 = vpop.f32.mrb[0].mxu0
    %v1362 = vadd.f32 %v1201, %v1361
    %v1363 = vpop.f32.mrb[0].mxu0
    %v1364 = vpop.f32.mrb[0].mxu0
    %v1365 = vadd.f32 %v1204, %v1364
    %v1366 = vpop.f32.mrb[0].mxu0
    %1367 = vmatprep.mubr.bf16.mxu0 %v846
    %1368 = vmatmul.mubr.bf16.gmra.mrb[0].mxu0 %v845
    %v1369 = vpop.f32.mrb[0].mxu0
    %v1370 = vadd.f32 %v1209, %v1369
    %v1371 = vpop.f32.mrb[0].mxu0
    %v1372 = vpop.f32.mrb[0].mxu0
    %v1373 = vadd.f32 %v1212, %v1372
    %v1374 = vpop.f32.mrb[0].mxu0
    %1375 = vmatprep.mubr.bf16.mxu0 %v850
    %1376 = vmatmul.mubr.bf16.gmra.mrb[0].mxu0 %v849
    %v1377 = vpop.f32.mrb[0].mxu0
    %v1378 = vadd.f32 %v1217, %v1377
    %v1379 = vpop.f32.mrb[0].mxu0
    %v1380 = vpop.f32.mrb[0].mxu0
    %v1381 = vadd.f32 %v1220, %v1380
    %v1382 = vpop.f32.mrb[0].mxu0
    %1383 = vmatprep.mubr.bf16.mxu0 %v854
    %1384 = vmatmul.mubr.bf16.gmra.mrb[0].mxu0 %v853
    %v1385 = vpop.f32.mrb[0].mxu0
    %v1386 = vadd.f32 %v1225, %v1385
    %v1387 = vpop.f32.mrb[0].mxu0
    %v1388 = vpop.f32.mrb[0].mxu0
    %v1389 = vadd.f32 %v1228, %v1388
    %v1390 = vpop.f32.mrb[0].mxu0
    %1391 = vmatprep.mubr.bf16.mxu0 %v858
    %1392 = vmatmul.mubr.bf16.gmra.mrb[0].mxu0 %v857
    %v1393 = vpop.f32.mrb[0].mxu0
    %v1394 = vadd.f32 %v1233, %v1393
    %v1395 = vpop.f32.mrb[0].mxu0
    %v1396 = vpop.f32.mrb[0].mxu0
    %v1397 = vadd.f32 %v1236, %v1396
    %v1398 = vpop.f32.mrb[0].mxu0
    %1399 = vmatprep.mubr.bf16.mxu0 %v862
    %1400 = vmatmul.mubr.bf16.gmra.mrb[0].mxu0 %v861
    %v1401 = vpop.f32.mrb[0].mxu0
    %v1402 = vadd.f32 %v1241, %v1401
    %v1403 = vpop.f32.mrb[0].mxu0
    %v1404 = vpop.f32.mrb[0].mxu0
    %v1405 = vadd.f32 %v1244, %v1404
    %v1406 = vpop.f32.mrb[0].mxu0
    %1407 = vmatprep.mubr.bf16.mxu0 %v866
    %1408 = vmatmul.mubr.bf16.gmra.mrb[0].mxu0 %v865
    %v1409 = vpop.f32.mrb[0].mxu0
    %v1410 = vadd.f32 %v1249, %v1409
    %v1411 = vpop.f32.mrb[0].mxu0
    %v1412 = vpop.f32.mrb[0].mxu0
    %v1413 = vadd.f32 %v1252, %v1412
    %v1414 = vpop.f32.mrb[0].mxu0
    %1415 = vmatprep.mubr.bf16.mxu0 %v870
    %1416 = vmatmul.mubr.bf16.gmra.mrb[0].mxu0 %v869
    %v1417 = vpop.f32.mrb[0].mxu0
    %v1418 = vadd.f32 %v1257, %v1417
    %v1419 = vpop.f32.mrb[0].mxu0
    %v1420 = vpop.f32.mrb[0].mxu0
    %v1421 = vadd.f32 %v1260, %v1420
    %v1422 = vpop.f32.mrb[0].mxu0
    %1423 = vmatprep.mubr.bf16.mxu0 %v874
    %1424 = vmatmul.mubr.bf16.gmra.mrb[0].mxu0 %v873
    %v1425 = vpop.f32.mrb[0].mxu0
    %v1426 = vadd.f32 %v1265, %v1425
    %v1427 = vpop.f32.mrb[0].mxu0
    %v1428 = vpop.f32.mrb[0].mxu0
    %v1429 = vadd.f32 %v1268, %v1428
    %v1430 = vpop.f32.mrb[0].mxu0
    %1431 = vmatprep.mubr.bf16.mxu0 %v878
    %1432 = vmatmul.mubr.bf16.gmra.mrb[0].mxu0 %v877
    %v1433 = vpop.f32.mrb[0].mxu0
    %v1434 = vadd.f32 %v1273, %v1433
    %v1435 = vpop.f32.mrb[0].mxu0
    %v1436 = vpop.f32.mrb[0].mxu0
    %v1437 = vadd.f32 %v1276, %v1436
    %v1438 = vpop.f32.mrb[0].mxu0
    %1439 = vmatprep.mubr.bf16.mxu0 %v882
    %1440 = vmatmul.mubr.bf16.gmra.mrb[0].mxu0 %v881
    %v1441 = vpop.f32.mrb[0].mxu0
    %v1442 = vadd.f32 %v1281, %v1441
    %v1443 = vpop.f32.mrb[0].mxu0
    %v1444 = vpop.f32.mrb[0].mxu0
    %v1445 = vadd.f32 %v1284, %v1444
    %v1446 = vpop.f32.mrb[0].mxu0
    %1447 = vmatprep.mubr.bf16.mxu0 %v886
    %1448 = vmatmul.mubr.bf16.gmra.mrb[0].mxu0 %v885
    %v1449 = vpop.f32.mrb[0].mxu0
    %v1450 = vadd.f32 %v1289, %v1449
    %v1451 = vpop.f32.mrb[0].mxu0
    %v1452 = vpop.f32.mrb[0].mxu0
    %v1453 = vadd.f32 %v1292, %v1452
    %v1454 = vpop.f32.mrb[0].mxu0
    %1455 = vmatprep.mubr.bf16.mxu0 %v890
    %1456 = vmatmul.mubr.bf16.gmra.mrb[0].mxu0 %v889
    %v1457 = vpop.f32.mrb[0].mxu0
    %v1458 = vadd.f32 %v1297, %v1457
    %v1459 = vpop.f32.mrb[0].mxu0
    %v1460 = vpop.f32.mrb[0].mxu0
    %v1461 = vadd.f32 %v1300, %v1460
    %v1462 = vpop.f32.mrb[0].mxu0
    %1463 = vmatprep.mubr.bf16.mxu0 %v894
    %1464 = vmatmul.mubr.bf16.gmra.mrb[0].mxu0 %v893
    %v1465 = vpop.f32.mrb[0].mxu0
    %v1466 = vadd.f32 %v1305, %v1465
    %v1467 = vpop.f32.mrb[0].mxu0
    %v1468 = vpop.f32.mrb[0].mxu0
    %v1469 = vadd.f32 %v1308, %v1468
    %v1470 = vpop.f32.mrb[0].mxu0
    %1471 = vmatprep.mubr.bf16.mxu0 %v898
    %1472 = vmatmul.mubr.bf16.gmra.mrb[0].mxu0 %v897
    %v1473 = vpop.f32.mrb[0].mxu0
    %v1474 = vadd.f32 %v1313, %v1473
    %v1475 = vpop.f32.mrb[0].mxu0
    %v1476 = vpop.f32.mrb[0].mxu0
    %v1477 = vadd.f32 %v1316, %v1476
    %v1478 = vpop.f32.mrb[0].mxu0
    %1479 = vmatprep.mubr.bf16.mxu0 %v902
    %1480 = vmatmul.mubr.bf16.gmra.mrb[0].mxu0 %v901
    %v1481 = vpop.f32.mrb[0].mxu0
    %v1482 = vadd.f32 %v1321, %v1481
    %v1483 = vpop.f32.mrb[0].mxu0
    %v1484 = vpop.f32.mrb[0].mxu0
    %v1485 = vadd.f32 %v1324, %v1484
    %v1486 = vpop.f32.mrb[0].mxu0
    %1487 = vdwg.mxu0
    %1488 = vst [vmem:[#allocation8] sm:$0xff] %v1362
    %1489 = vst [vmem:[#allocation8 + $0x8] sm:$0xff] %v1365
    %1490 = vst [vmem:[#allocation8 + $0x10] sm:$0xff] %v1370
    %1491 = vst [vmem:[#allocation8 + $0x18] sm:$0xff] %v1373
    %1492 = vst [vmem:[#allocation8 + $0x20] sm:$0xff] %v1378
    %1493 = vst [vmem:[#allocation8 + $0x28] sm:$0xff] %v1381
    %1494 = vst [vmem:[#allocation8 + $0x30] sm:$0xff] %v1386
    %1495 = vst [vmem:[#allocation8 + $0x38] sm:$0xff] %v1389
    %1496 = vst [vmem:[#allocation8 + $0x40] sm:$0xff] %v1394
    %1497 = vst [vmem:[#allocation8 + $0x48] sm:$0xff] %v1397
    %1498 = vst [vmem:[#allocation8 + $0x50] sm:$0xff] %v1402
    %1499 = vst [vmem:[#allocation8 + $0x58] sm:$0xff] %v1405
    %1500 = vst [vmem:[#allocation8 + $0x60] sm:$0xff] %v1410
    %1501 = vst [vmem:[#allocation8 + $0x68] sm:$0xff] %v1413
    %1502 = vst [vmem:[#allocation8 + $0x70] sm:$0xff] %v1418
    %1503 = vst [vmem:[#allocation8 + $0x78] sm:$0xff] %v1421
    %1504 = vst [vmem:[#allocation8 + $0x80] sm:$0xff] %v1426
    %1505 = vst [vmem:[#allocation8 + $0x88] sm:$0xff] %v1429
    %1506 = vst [vmem:[#allocation8 + $0x90] sm:$0xff] %v1434
    %1507 = vst [vmem:[#allocation8 + $0x98] sm:$0xff] %v1437
    %1508 = vst [vmem:[#allocation8 + $0xa0] sm:$0xff] %v1442
    %1509 = vst [vmem:[#allocation8 + $0xa8] sm:$0xff] %v1445
    %1510 = vst [vmem:[#allocation8 + $0xb0] sm:$0xff] %v1450
    %1511 = vst [vmem:[#allocation8 + $0xb8] sm:$0xff] %v1453
    %1512 = vst [vmem:[#allocation8 + $0xc0] sm:$0xff] %v1458
    %1513 = vst [vmem:[#allocation8 + $0xc8] sm:$0xff] %v1461
    %1514 = vst [vmem:[#allocation8 + $0xd0] sm:$0xff] %v1466
    %1515 = vst [vmem:[#allocation8 + $0xd8] sm:$0xff] %v1469
    %1516 = vst [vmem:[#allocation8 + $0xe0] sm:$0xff] %v1474
    %1517 = vst [vmem:[#allocation8 + $0xe8] sm:$0xff] %v1477
    %1518 = vst [vmem:[#allocation8 + $0xf0] sm:$0xff] %v1482
    %1519 = vst [vmem:[#allocation8 + $0xf8] sm:$0xff] %v1485
    // Predicated region
    $region34: #{tpu_custom_call.1} parent=1 // pred_check
      _
    $region35: #{tpu_custom_call.1} parent=1 // pred_check_branch
      %1521 = sbr.rel (0) target = $region37
    $region36: #{tpu_custom_call.1} parent=1 // pred_region
      %s1523 = ssub.s32 4096, 4096
      %1524 = vsyncadd [#allocation4], %s1523
      %s1525 = sshll.u32 [#allocation8], 4
      %s1526 = int_to_ptr.vmem [resolvable:$true] %s1525
      %1531 = dma.vmem_to_hbm [thread:$0]  %s1526, 4096, %s5, [#allocation4], 128, 128, 8
    $region37: #{tpu_custom_call.1} parent=1 // pred_fallthru
      _
    // Predicated region
    $region38: #{tpu_custom_call.1} parent=1 // pred_check
      _
    $region39: #{tpu_custom_call.1} parent=1 // pred_check_branch
      %1533 = sbr.rel (0) target = $region41
    $region40: #{tpu_custom_call.1} parent=1 // pred_region
      %1534 = dma.done [#allocation4], 4096
    $region41: #{tpu_custom_call.1} parent=1 // pred_fallthru
      _
    %1535 = vsyncpa [#allocation3], 1
    %1536 = vsyncpa [#allocation6], 1
    %1537 = vsyncpa [#allocation4], 1

</llo_original>
